<compile_context>
chip_gen: v7x
topology: tpu7x:2x2x1
jax: 0.10.0
libtpu: 0.0.40
codegen_flags: <defaults>
</compile_context>

<pallas_src>
import functools
import math
from types import SimpleNamespace

import numpy as np
import jax
import jax.numpy as jnp
from jax.experimental import pallas as pl
from jax.experimental.pallas import tpu as pltpu


# ----------------------------------------------------------------------------
# generation-aware compiler params / helpers
# ----------------------------------------------------------------------------
def _vmem_limit_bytes():
    cap = 128 * 1024 * 1024
    try:
        info = pltpu.get_tpu_info()
        cap = int(getattr(info, "vmem_capacity_bytes", cap))
    except Exception:
        pass
    # ~75% of physical VMEM, never more than 64 MiB (v5e/v6e sweet spot,
    # ~48 MiB on v7x which only has 64 MiB per TensorCore).
    return min((cap * 3) // 4, 64 * 1024 * 1024)


_VMEM_LIMIT = _vmem_limit_bytes()

_CPARAMS = pltpu.CompilerParams(
    dimension_semantics=("parallel",),
    vmem_limit_bytes=_VMEM_LIMIT,
)

_SQRT_2_OVER_PI = 0.7978845608028654


def _probe_buffered1():
    """Check once whether pipeline_mode=pl.Buffered(1) is supported."""
    try:
        def k(c_ref, x_ref, o_ref):
            o_ref[...] = x_ref[...] + c_ref[...]

        x = jnp.ones((16, 128), jnp.float32)
        c = jnp.ones((1, 128), jnp.float32)
        f = pl.pallas_call(
            k,
            grid=(2,),
            in_specs=[
                pl.BlockSpec((1, 128), lambda i: (0, 0),
                             pipeline_mode=pl.Buffered(1)),
                pl.BlockSpec((8, 128), lambda i: (i, 0)),
            ],
            out_specs=pl.BlockSpec((8, 128), lambda i: (i, 0)),
            out_shape=jax.ShapeDtypeStruct((16, 128), jnp.float32),
            compiler_params=_CPARAMS,
        )
        out = jax.block_until_ready(f(c, x))
        return bool(jnp.all(out == 2.0))
    except Exception:
        return False


_HAS_BUFFERED1 = _probe_buffered1()


def _const_spec(shape, index_map):
    """Spec for grid-invariant (resident) operands; single-buffered when
    supported, which halves their VMEM cost."""
    if _HAS_BUFFERED1:
        return pl.BlockSpec(shape, index_map, pipeline_mode=pl.Buffered(1))
    return pl.BlockSpec(shape, index_map)


def _pick_tile(m, row_bytes=0, budget_bytes=None,
               candidates=(1024, 512, 256, 128, 64, 32, 16, 8)):
    """Largest row tile dividing m that fits the VMEM budget; prefers an even
    number of grid steps (megacore balance on v7x)."""
    fitting = [t for t in candidates
               if t <= m and m % t == 0
               and (budget_bytes is None or t * row_bytes <= budget_bytes)]
    if fitting:
        even = [t for t in fitting if (m // t) % 2 == 0]
        if even and even[0] * 2 >= fitting[0]:
            return even[0]
        return fitting[0]
    divisors = [t for t in candidates if t <= m and m % t == 0]
    return divisors[-1] if divisors else m


def _gelu(x):
    # tanh-approximation GELU: one EUP transcendental instead of a ~15-op
    # erf polynomial on the VPU.
    # TODO(synk): PyTorch nn.GELU default is exact erf; tanh approx differs <1e-3.
    return 0.5 * x * (1.0 + jnp.tanh(_SQRT_2_OVER_PI * (x + 0.044715 * x * x * x)))


# ----------------------------------------------------------------------------
# DINO head: three row-tiled kernels (matmul + fused batch-stat emission)
# ----------------------------------------------------------------------------
def _mm_stats_kernel(x_ref, rw_ref, w_ref, b_ref, h_ref, s_ref, q_ref, *, vpu_path):
    if vpu_path:
        # tiny contraction dim (e.g. folded 1x1 conv, cin=3): broadcast FMAs
        # on the VPU instead of a ~2%-utilization MXU matmul.
        x = x_ref[...]
        w = w_ref[...]
        h = x[:, 0:1] * w[0:1, :]
        for c in range(1, x.shape[1]):
            h = h + x[:, c:c + 1] * w[c:c + 1, :]
        h = h + b_ref[...]
    else:
        h = jnp.dot(x_ref[...].astype(jnp.bfloat16), w_ref[...],
                    preferred_element_type=jnp.float32) + b_ref[...]
    h_ref[...] = h.astype(h_ref.dtype)
    hw = h * rw_ref[...]                                  # row-weighted (0/1)
    s_ref[...] = jnp.sum(hw, axis=0, keepdims=True)[None]
    q_ref[...] = jnp.sum(hw * h, axis=0, keepdims=True)[None]


def _bn_gelu_mm_stats_kernel(h_ref, sc_ref, sh_ref, rw_ref, w_ref, b_ref,
                             o_ref, s_ref, q_ref):
    # BN folded to scale/shift -> one FMA per element before GELU.
    a = _gelu(h_ref[...].astype(jnp.float32) * sc_ref[...] + sh_ref[...])
    o = jnp.dot(a.astype(jnp.bfloat16), w_ref[...],
                preferred_element_type=jnp.float32) + b_ref[...]
    o_ref[...] = o.astype(o_ref.dtype)
    ow = o * rw_ref[...]
    s_ref[...] = jnp.sum(ow, axis=0, keepdims=True)[None]
    q_ref[...] = jnp.sum(ow * o, axis=0, keepdims=True)[None]


def _bn_gelu_mm_kernel(h_ref, sc_ref, sh_ref, w_ref, b_ref, o_ref):
    a = _gelu(h_ref[...].astype(jnp.float32) * sc_ref[...] + sh_ref[...])
    o_ref[...] = (jnp.dot(a.astype(jnp.bfloat16), w_ref[...],
                          preferred_element_type=jnp.float32)
                  + b_ref[...]).astype(o_ref.dtype)


def _mm_stats_pallas(x, row_w, w, b, tm, vpu_path, h_dtype):
    M, cin = x.shape
    H = w.shape[1]
    G = M // tm
    return pl.pallas_call(
        functools.partial(_mm_stats_kernel, vpu_path=vpu_path),
        grid=(G,),
        in_specs=[
            pl.BlockSpec((tm, cin), lambda i: (i, 0)),
            pl.BlockSpec((tm, 1), lambda i: (i, 0)),
            _const_spec((cin, H), lambda i: (0, 0)),
            _const_spec((1, H), lambda i: (0, 0)),
        ],
        out_specs=(
            pl.BlockSpec((tm, H), lambda i: (i, 0)),
            pl.BlockSpec((1, 1, H), lambda i: (i, 0, 0)),
            pl.BlockSpec((1, 1, H), lambda i: (i, 0, 0)),
        ),
        out_shape=(
            jax.ShapeDtypeStruct((M, H), h_dtype),
            jax.ShapeDtypeStruct((G, 1, H), jnp.float32),
            jax.ShapeDtypeStruct((G, 1, H), jnp.float32),
        ),
        compiler_params=_CPARAMS,
    )(x, row_w, w, b)


def _bn_gelu_mm_stats_pallas(h, sc, sh, row_w, w, b, tm, h_dtype):
    M, hin = h.shape
    hout = w.shape[1]
    G = M // tm
    return pl.pallas_call(
        _bn_gelu_mm_stats_kernel,
        grid=(G,),
        in_specs=[
            pl.BlockSpec((tm, hin), lambda i: (i, 0)),
            _const_spec((1, hin), lambda i: (0, 0)),
            _const_spec((1, hin), lambda i: (0, 0)),
            pl.BlockSpec((tm, 1), lambda i: (i, 0)),
            _const_spec((hin, hout), lambda i: (0, 0)),
            _const_spec((1, hout), lambda i: (0, 0)),
        ],
        out_specs=(
            pl.BlockSpec((tm, hout), lambda i: (i, 0)),
            pl.BlockSpec((1, 1, hout), lambda i: (i, 0, 0)),
            pl.BlockSpec((1, 1, hout), lambda i: (i, 0, 0)),
        ),
        out_shape=(
            jax.ShapeDtypeStruct((M, hout), h_dtype),
            jax.ShapeDtypeStruct((G, 1, hout), jnp.float32),
            jax.ShapeDtypeStruct((G, 1, hout), jnp.float32),
        ),
        compiler_params=_CPARAMS,
    )(h, sc, sh, row_w, w, b)


def _bn_gelu_mm_pallas(h, sc, sh, w, b, tm, out_dtype):
    M, hin = h.shape
    hout = w.shape[1]
    G = M // tm
    return pl.pallas_call(
        _bn_gelu_mm_kernel,
        grid=(G,),
        in_specs=[
            pl.BlockSpec((tm, hin), lambda i: (i, 0)),
            _const_spec((1, hin), lambda i: (0, 0)),
            _const_spec((1, hin), lambda i: (0, 0)),
            _const_spec((hin, hout), lambda i: (0, 0)),
            _const_spec((1, hout), lambda i: (0, 0)),
        ],
        out_specs=pl.BlockSpec((tm, hout), lambda i: (i, 0)),
        out_shape=jax.ShapeDtypeStruct((M, hout), out_dtype),
        compiler_params=_CPARAMS,
    )(h, sc, sh, w, b)


def dino_head_pallas(x, p, row_w=None, out_dtype=jnp.float32):
    """3-layer head: Linear -> BN -> GELU -> Linear -> BN -> GELU -> Linear.

    Train-mode BatchNorm statistics are exact across row tiles (per-tile sums
    emitted by the producing kernel, finalized in JAX).  `row_w` (0/1 column)
    restricts the statistics to valid rows (used by the predictor).  Inter-layer
    activations are stored in bf16 to halve HBM round-trip traffic; stats stay
    in f32.
    TODO(synk): train-mode variance uses E[x^2]-E[x]^2 in f32; switch to a
    two-pass sum((x-mu)^2) variant if cancellation drift is ever observed."""
    M, cin = x.shape
    hidden = p['w2'].shape[0]
    outd = p['w3'].shape[1]
    if row_w is None:
        row_w = jnp.ones((M, 1), jnp.float32)
    wsum = jnp.maximum(jnp.sum(row_w), 1.0)

    # VMEM-aware row tile: resident bf16 weight (x1 if single-buffered, x2 if
    # double-buffered) plus ~8 B/row/col of streaming activation tiles.
    wbytes = 2 * max(cin * hidden, hidden * hidden, hidden * outd)
    if not _HAS_BUFFERED1:
        wbytes *= 2
    row_bytes = 8 * (max(cin, hidden) + max(hidden, outd))
    budget = max(_VMEM_LIMIT - wbytes - (4 << 20), 1 << 20)
    tm = _pick_tile(M, row_bytes=row_bytes, budget_bytes=budget)

    vpu1 = cin <= 8
    w1 = p['w1'].astype(jnp.float32 if vpu1 else jnp.bfloat16)
    w2 = p['w2'].astype(jnp.bfloat16)
    w3 = p['w3'].astype(jnp.bfloat16)

    h1, s1, q1 = _mm_stats_pallas(x, row_w, w1, p['b1'], tm, vpu1, jnp.bfloat16)
    mu1 = jnp.sum(s1, axis=0) / wsum
    var1 = jnp.maximum(jnp.sum(q1, axis=0) / wsum - mu1 * mu1, 0.0)
    sc1 = jax.lax.rsqrt(var1 + 1e-5) * p['g1']
    sh1 = p['be1'] - mu1 * sc1

    h2, s2, q2 = _bn_gelu_mm_stats_pallas(h1, sc1, sh1, row_w, w2, p['b2'],
                                          tm, jnp.bfloat16)
    mu2 = jnp.sum(s2, axis=0) / wsum
    var2 = jnp.maximum(jnp.sum(q2, axis=0) / wsum - mu2 * mu2, 0.0)
    sc2 = jax.lax.rsqrt(var2 + 1e-5) * p['g2']
    sh2 = p['be2'] - mu2 * sc2

    return _bn_gelu_mm_pallas(h2, sc2, sh2, w3, p['b3'], tm, out_dtype)


# ----------------------------------------------------------------------------
# SemanticGrouping kernel (lane-dense: last dim is D / K, not HW)
# ----------------------------------------------------------------------------
def _grouping_kernel(sn_ref, x_ref, slots_ref, dots_ref, *, inv_temp, eps):
    sn = sn_ref[...]                                     # (K, D) bf16, resident
    x = x_ref[...]                                       # (b, HW, D) bf16
    b, HW, D = x.shape
    K = sn.shape[0]
    x32 = x.astype(jnp.float32)
    inv_n = jax.lax.rsqrt(
        jnp.maximum(jnp.sum(x32 * x32, axis=-1, keepdims=True), 1e-24))
    xn = (x32 * inv_n).astype(jnp.bfloat16)
    sn_b = jnp.broadcast_to(sn[None], (b, K, D))
    dots = jnp.einsum('bhd,bkd->bhk', xn, sn_b,
                      preferred_element_type=jnp.float32)          # (b, HW, K)
    dots_ref[...] = dots
    scaled = dots * inv_temp
    scaled = scaled - jnp.max(scaled, axis=-1, keepdims=True)      # softmax / K
    e = jnp.exp(scaled)
    attn = e * pl.reciprocal(jnp.sum(e, axis=-1, keepdims=True), approx=True) + eps
    attn_w = attn * pl.reciprocal(jnp.sum(attn, axis=1, keepdims=True), approx=True)
    slots_ref[...] = jnp.einsum('bhk,bhd->bkd', attn_w.astype(jnp.bfloat16), x,
                                preferred_element_type=jnp.float32)  # (b, K, D)


def grouping_pallas(slot_embed, x_nhwd, temp, eps=1e-6):
    N, H, W, D = x_nhwd.shape
    HW = H * W
    K = slot_embed.shape[0]
    b_tile = 1
    for c in (8, 4, 2, 1):
        if N % c == 0:
            b_tile = c
            break
    x3 = x_nhwd.reshape(N, HW, D)
    # hoist slot L2 normalization out of the per-batch grid (tiny K x D)
    sn = slot_embed * jax.lax.rsqrt(
        jnp.maximum(jnp.sum(slot_embed * slot_embed, axis=1, keepdims=True), 1e-24))
    sn = sn.astype(jnp.bfloat16)
    slots, dots = pl.pallas_call(
        functools.partial(_grouping_kernel, inv_temp=1.0 / float(temp),
                          eps=float(eps)),
        grid=(N // b_tile,),
        in_specs=[
            _const_spec((K, D), lambda b: (0, 0)),
            pl.BlockSpec((b_tile, HW, D), lambda b: (b, 0, 0)),
        ],
        out_specs=(
            pl.BlockSpec((b_tile, K, D), lambda b: (b, 0, 0)),
            pl.BlockSpec((b_tile, HW, K), lambda b: (b, 0, 0)),
        ),
        out_shape=(
            jax.ShapeDtypeStruct((N, K, D), jnp.float32),
            jax.ShapeDtypeStruct((N, HW, K), jnp.float32),
        ),
        compiler_params=_CPARAMS,
    )(sn, x3)
    score = jnp.transpose(dots.reshape(N, H, W, K), (0, 3, 1, 2))   # (N, K, H, W)
    return slots, score


# ----------------------------------------------------------------------------
# loss kernels (row-tiled, per-tile partial sums)
# ----------------------------------------------------------------------------
def _self_distill_kernel(q_ref, k_ref, c_ref, o_ref, *, inv_student_temp,
                         inv_teacher_temp):
    q = q_ref[...] * inv_student_temp
    q = q - jnp.max(q, axis=-1, keepdims=True)
    logq = q - jnp.log(jnp.sum(jnp.exp(q), axis=-1, keepdims=True))   # log_softmax
    t = (k_ref[...] - c_ref[...]) * inv_teacher_temp
    t = t - jnp.max(t, axis=-1, keepdims=True)
    et = jnp.exp(t)
    sk = et / jnp.sum(et, axis=-1, keepdims=True)                      # exact softmax
    per_row = jnp.sum(-sk * logq, axis=-1, keepdims=True)              # (TM, 1)
    o_ref[...] = jnp.sum(per_row, keepdims=True)[None]                 # (1, 1, 1)


def self_distill_pallas(q, k, center, student_temp, teacher_temp):
    M, P = q.shape
    tm = _pick_tile(M)
    G = M // tm
    partial = pl.pallas_call(
        functools.partial(_self_distill_kernel,
                          inv_student_temp=1.0 / float(student_temp),
                          inv_teacher_temp=1.0 / float(teacher_temp)),
        grid=(G,),
        in_specs=[
            pl.BlockSpec((tm, P), lambda i: (i, 0)),
            pl.BlockSpec((tm, P), lambda i: (i, 0)),
            _const_spec((1, P), lambda i: (0, 0)),
        ],
        out_specs=pl.BlockSpec((1, 1, 1), lambda i: (i, 0, 0)),
        out_shape=jax.ShapeDtypeStruct((G, 1, 1), jnp.float32),
        compiler_params=_CPARAMS,
    )(q, k, center)
    return jnp.sum(partial) / M


def _ctr_loss_kernel(q_ref, kn_ref, rowv_ref, colv_ref, o_ref, *, inv_tau, tq):
    i = pl.program_id(0)
    q = q_ref[...].astype(jnp.float32)                                  # (TQ, D)
    qn = q * jax.lax.rsqrt(jnp.maximum(jnp.sum(q * q, axis=1, keepdims=True), 1e-24))
    logits = jax.lax.dot_general(
        qn.astype(jnp.bfloat16), kn_ref[...],                           # kn pre-cast bf16
        (((1,), (1,)), ((), ())), preferred_element_type=jnp.float32) * inv_tau
    colv = colv_ref[...]                                                # (1, NK)
    masked = jnp.where(colv > 0.0, logits, -1e30)
    m = jnp.max(masked, axis=1, keepdims=True)
    lse = m + jnp.log(jnp.sum(jnp.exp(masked - m), axis=1, keepdims=True))
    col_ids = jax.lax.broadcasted_iota(jnp.int32, logits.shape, 1)
    row_ids = i * tq + jax.lax.broadcasted_iota(jnp.int32, logits.shape, 0)
    pos = jnp.sum(jnp.where(col_ids == row_ids, logits, 0.0), axis=1, keepdims=True)
    per_row = (lse - pos) * rowv_ref[...]                               # (TQ, 1)
    o_ref[...] = jnp.sum(per_row, keepdims=True)[None]                  # (1, 1, 1)


def ctr_loss_pallas(q_pred, kn_bf16, row_valid, col_valid, tau):
    NK, D = q_pred.shape
    kbytes = 2 * NK * D * (1 if _HAS_BUFFERED1 else 2)
    budget = max(_VMEM_LIMIT - kbytes - (4 << 20), 1 << 20)
    row_bytes = 8 * D + 8 * NK
    tq = _pick_tile(NK, row_bytes=row_bytes, budget_bytes=budget)
    G = NK // tq
    partial = pl.pallas_call(
        functools.partial(_ctr_loss_kernel, inv_tau=1.0 / float(tau), tq=tq),
        grid=(G,),
        in_specs=[
            pl.BlockSpec((tq, D), lambda i: (i, 0)),
            _const_spec((NK, D), lambda i: (0, 0)),
            pl.BlockSpec((tq, 1), lambda i: (i, 0)),
            _const_spec((1, NK), lambda i: (0, 0)),
        ],
        out_specs=pl.BlockSpec((1, 1, 1), lambda i: (i, 0, 0)),
        out_shape=jax.ShapeDtypeStruct((G, 1, 1), jnp.float32),
        compiler_params=_CPARAMS,
    )(q_pred, kn_bf16, row_valid, col_valid)
    n_valid = jnp.maximum(jnp.sum(row_valid), 1.0)
    return (jnp.sum(partial) / n_valid) * (2.0 * tau)


# ----------------------------------------------------------------------------
# non-kernel glue
# ----------------------------------------------------------------------------
def _bilinear_sample(img, ys, xs):
    # img: (C, H, W); ys: (Hout,); xs: (Wout,)
    C, H, W = img.shape
    y = jnp.clip(ys, 0.0, H - 1.0)
    x = jnp.clip(xs, 0.0, W - 1.0)
    y0 = jnp.floor(y).astype(jnp.int32)
    x0 = jnp.floor(x).astype(jnp.int32)
    y1 = jnp.minimum(y0 + 1, H - 1)
    x1 = jnp.minimum(x0 + 1, W - 1)
    wy = (y - y0.astype(jnp.float32))[None, :, None]
    wx = (x - x0.astype(jnp.float32))[None, None, :]

    def gather(yi, xi):
        g = jnp.take(img, yi, axis=1)
        return jnp.take(g, xi, axis=2)

    v00 = gather(y0, x0)
    v01 = gather(y0, x1)
    v10 = gather(y1, x0)
    v11 = gather(y1, x1)
    return (v00 * (1 - wy) * (1 - wx) + v01 * (1 - wy) * wx +
            v10 * wy * (1 - wx) + v11 * wy * wx)


def _init_dino_head(key, in_dim, hidden, out_dim):
    ks = jax.random.split(key, 3)

    def tn(k, shape):
        return 0.02 * jax.random.truncated_normal(k, -2.0, 2.0, shape, jnp.float32)

    return dict(
        w1=tn(ks[0], (in_dim, hidden)), b1=jnp.zeros((1, hidden), jnp.float32),
        g1=jnp.ones((1, hidden), jnp.float32), be1=jnp.zeros((1, hidden), jnp.float32),
        w2=tn(ks[1], (hidden, hidden)), b2=jnp.zeros((1, hidden), jnp.float32),
        g2=jnp.ones((1, hidden), jnp.float32), be2=jnp.zeros((1, hidden), jnp.float32),
        w3=tn(ks[2], (hidden, out_dim)), b3=jnp.zeros((1, out_dim), jnp.float32),
    )


class SlotConPallas:
    # TODO(synk): the SlotConSPR extension (transformer_transition / action_emb /
    # spr_loss) depends on build_transformer_encoder, which is not specified; only
    # the SlotCon forward (the loss-producing path) is implemented here.
    def __init__(self, args, key):
        self.dim_hidden = args.dim_hidden
        self.dim_out = args.dim_out
        self.teacher_momentum = args.teacher_momentum
        if args.arch in ('resnet_small', 'resnet18', 'resnet34'):
            self.num_channels = 512
        elif args.arch == 'spr_cnn':
            self.num_channels = 64
        elif args.arch == 'resnet3l':
            self.num_channels = 256
        else:
            self.num_channels = 2048
        self.group_loss_weight = args.group_loss_weight
        self.student_temp = args.student_temp
        self.teacher_temp = args.teacher_temp
        self.num_prototypes = args.num_prototypes
        self.center_momentum = args.center_momentum

        ks = jax.random.split(key, 4)
        # synthetic encoder: single 1x1 conv (3 -> num_channels), early_return head
        self.enc_q = dict(
            w=0.05 * jax.random.normal(ks[0], (3, self.num_channels), jnp.float32),
            b=jnp.zeros((1, self.num_channels), jnp.float32))
        self.enc_k = jax.tree_util.tree_map(lambda a: a, self.enc_q)
        self.proj_q = _init_dino_head(ks[1], self.num_channels, self.dim_hidden, self.dim_out)
        self.proj_k = jax.tree_util.tree_map(lambda a: a, self.proj_q)
        self.slot_q = jax.random.normal(ks[2], (self.num_prototypes, self.dim_out), jnp.float32)
        self.slot_k = self.slot_q
        self.predictor = _init_dino_head(ks[3], self.dim_out, self.dim_hidden, self.dim_out)
        self.center = jnp.zeros((1, self.num_prototypes), jnp.float32)
        self.K = int(args.num_instances * 1.0 / args.world_size / args.batch_size * args.epochs)
        self.k = int(args.num_instances * 1.0 / args.world_size / args.batch_size * (args.start_epoch - 1))

    # ---------------- forward pieces ----------------
    def _encode_project(self, crop, enc, proj):
        N, C, H, W = crop.shape
        x = jnp.transpose(crop, (0, 2, 3, 1)).reshape(N * H * W, C)
        # Fold the 1x1 encoder conv into the projector's first matmul (no
        # nonlinearity in between): the (M, num_channels) feats slab never
        # touches HBM.  Exact: h1 = (x@We + be)@W1 + b1 = x@(We@W1) + (be@W1 + b1).
        w_eff = enc['w'] @ proj['w1']
        b_eff = enc['b'] @ proj['w1'] + proj['b1']
        fold = dict(proj, w1=w_eff, b1=b_eff)
        z = dino_head_pallas(x, fold, out_dtype=jnp.bfloat16)
        return z.reshape(N, H, W, self.dim_out)          # lane-dense NHWC(-like)

    def _momentum_update_key_encoder(self):
        m = 1.0 - (1.0 - self.teacher_momentum) * (math.cos(math.pi * self.k / self.K) + 1.0) * 0.5
        self.k += 1
        ema = lambda pk, pq: pk * m + pq * (1.0 - m)
        self.enc_k = jax.tree_util.tree_map(ema, self.enc_k, self.enc_q)
        self.proj_k = jax.tree_util.tree_map(ema, self.proj_k, self.proj_q)
        self.slot_k = ema(self.slot_k, self.slot_q)

    def invaug(self, x, coords, flags):
        # TODO(synk): torchvision.ops.roi_align with adaptive sampling_ratio has no
        # clean Pallas equivalent; bilinear sampling at bin centers (sampling_ratio=1,
        # aligned=True) is used -- exact for identity crops.
        N, C, H, W = x.shape
        coords = jnp.asarray(coords, jnp.float32)
        flags = jnp.asarray(flags)

        def one(img, coord, flag):
            x1 = coord[0] * W
            y1 = coord[1] * H
            x2 = coord[2] * W
            y2 = coord[3] * H
            bw = (x2 - x1) / W
            bh = (y2 - y1) / H
            xs = x1 + (jnp.arange(W, dtype=jnp.float32) + 0.5) * bw - 0.5
            ys = y1 + (jnp.arange(H, dtype=jnp.float32) + 0.5) * bh - 0.5
            feat = _bilinear_sample(img, ys, xs)
            return jnp.where(flag, feat[:, :, ::-1], feat)

        return jax.vmap(one)(x, coords, flags)

    def self_distill(self, q, k):
        return self_distill_pallas(q, k, self.center, self.student_temp, self.teacher_temp)

    def update_center(self, teacher_output):
        # TODO(synk): dist.all_reduce assumed world_size == 1 (single device)
        batch_center = jnp.sum(teacher_output, axis=0, keepdims=True) / float(teacher_output.shape[0])
        self.center = self.center * self.center_momentum + batch_center * (1.0 - self.center_momentum)

    def ctr_loss_filtered(self, q, k, score_q, score_k, tau=0.2):
        # Static-shape, fully on-device version of the filtered contrastive loss:
        # rows/columns are masked instead of gathered (no host nonzero / no
        # per-step recompiles); the positive for row i is column i.
        N, K, D = q.shape
        P = score_q.shape[1]
        q_flat = q.reshape(N * K, D)
        k_flat = k.reshape(N * K, D)
        am_q = jnp.argmax(score_q, axis=1)                       # (N, H, W)
        am_k = jnp.argmax(score_k, axis=1)
        protos = jnp.arange(P)
        mask_q = jnp.any(am_q[:, None, :, :] == protos[None, :, None, None], axis=(2, 3))
        mask_k = jnp.any(am_k[:, None, :, :] == protos[None, :, None, None], axis=(2, 3))
        row_valid = (mask_q & mask_k).reshape(N * K, 1).astype(jnp.float32)
        col_valid = mask_k.reshape(1, N * K).astype(jnp.float32)
        # TODO(synk): concat_all_gather / rank offset assumed world_size == 1
        # predictor over all slots; BN statistics restricted to the valid rows so
        # the valid outputs match predictor_slot(q[idxs_q]) of the reference.
        q_pred = dino_head_pallas(q_flat, self.predictor, row_w=row_valid,
                                  out_dtype=jnp.float32)
        kn = k_flat * jax.lax.rsqrt(
            jnp.maximum(jnp.sum(k_flat * k_flat, axis=1, keepdims=True), 1e-24))
        kn = kn.astype(jnp.bfloat16)                             # pre-cast resident block
        return ctr_loss_pallas(q_pred, kn, row_valid, col_valid, tau)

    def forward(self, inputs):
        crops, coords, flags = inputs
        x1 = self._encode_project(crops[0], self.enc_q, self.proj_q)
        x2 = self._encode_project(crops[1], self.enc_q, self.proj_q)

        self._momentum_update_key_encoder()
        y1 = self._encode_project(crops[0], self.enc_k, self.proj_k)
        y2 = self._encode_project(crops[1], self.enc_k, self.proj_k)

        q1, score_q1 = grouping_pallas(self.slot_q, x1, self.teacher_temp)
        q2, score_q2 = grouping_pallas(self.slot_q, x2, self.teacher_temp)
        q1_al = self.invaug(score_q1, coords[0], flags[0])
        q2_al = self.invaug(score_q2, coords[1], flags[1])

        k1, score_k1 = grouping_pallas(self.slot_k, y1, self.teacher_temp)
        k2, score_k2 = grouping_pallas(self.slot_k, y2, self.teacher_temp)
        k1_al = self.invaug(score_k1, coords[0], flags[0])
        k2_al = self.invaug(score_k2, coords[1], flags[1])

        P = self.num_prototypes

        def flat_nhwc(t):
            return jnp.transpose(t, (0, 2, 3, 1)).reshape(-1, P)

        loss = self.group_loss_weight * self.self_distill(flat_nhwc(q1_al), flat_nhwc(k2_al))
        loss = loss + self.group_loss_weight * self.self_distill(flat_nhwc(q2_al), flat_nhwc(k1_al))

        self.update_center(flat_nhwc(jnp.concatenate([score_k1, score_k2], axis=0)))

        loss = loss + (1.0 - self.group_loss_weight) * self.ctr_loss_filtered(q1, k2, score_q1, score_k2)
        loss = loss + (1.0 - self.group_loss_weight) * self.ctr_loss_filtered(q2, k1, score_q2, score_k1)
        return loss


# ----------------------------------------------------------------------------
if __name__ == "__main__":
    args = SimpleNamespace(
        dim_hidden=32, dim_out=16, teacher_momentum=0.99, arch='spr_cnn',
        group_loss_weight=0.5, student_temp=0.1, teacher_temp=0.07,
        num_prototypes=8, center_momentum=0.9, num_instances=100,
        world_size=1, batch_size=2, epochs=10, start_epoch=1)

    key = jax.random.PRNGKey(0)
    k_params, k_c1, k_c2 = jax.random.split(key, 3)
    model = SlotConPallas(args, k_params)

    crop1 = jax.random.normal(k_c1, (2, 3, 16, 16), jnp.float32)
    crop2 = jax.random.normal(k_c2, (2, 3, 16, 16), jnp.float32)
    coords = [jnp.tile(jnp.array([[0.0, 0.0, 1.0, 1.0]], jnp.float32), (2, 1)),
              jnp.tile(jnp.array([[0.0, 0.0, 1.0, 1.0]], jnp.float32), (2, 1))]
    flags = [np.array([True, False]), np.array([False, True])]

    loss = model.forward(([crop1, crop2], coords, flags))
    loss = jax.block_until_ready(loss)
    assert np.isfinite(float(loss))
    print("KERNEL_OK")
</pallas_src>

<mosaic_0001>
module attributes {stable_mosaic.version = 11 : i64} {
  func.func @k(%arg0: i32, %arg1: memref<1x128xf32, #tpu.memory_space<vmem>>, %arg2: memref<8x128xf32, #tpu.memory_space<vmem>>, %arg3: memref<8x128xf32, #tpu.memory_space<vmem>>) attributes {dimension_semantics = [#tpu.dimension_semantics<parallel>], iteration_bounds = array<i64: 2>, scalar_prefetch = 0 : i64, scratch_operands = 0 : i64, tpu.core_type = #tpu.core_type<tc>, window_params = [{pipeline_mode = #tpu.pipeline_mode<synchronous>, transform_indices = @transform_0, window_bounds = array<i64: 1, 128>}, {transform_indices = @transform_1, window_bounds = array<i64: 8, 128>}, {transform_indices = @transform_2, window_bounds = array<i64: 8, 128>}]} {
    %c0 = arith.constant 0 : index
    %c0_0 = arith.constant 0 : index
    %0 = vector.load %arg2[%c0, %c0_0] : memref<8x128xf32, #tpu.memory_space<vmem>>, vector<8x128xf32>
    %c0_1 = arith.constant 0 : index
    %c0_2 = arith.constant 0 : index
    %1 = vector.load %arg1[%c0_1, %c0_2] : memref<1x128xf32, #tpu.memory_space<vmem>>, vector<1x128xf32>
    %2 = vector.broadcast %1 : vector<1x128xf32> to vector<8x128xf32>
    %3 = arith.addf %0, %2 : vector<8x128xf32>
    %c0_3 = arith.constant 0 : index
    %c0_4 = arith.constant 0 : index
    %4 = vector.load %arg3[%c0_3, %c0_4] : memref<8x128xf32, #tpu.memory_space<vmem>>, vector<8x128xf32>
    tpu.vector_store %arg3[%c0_3, %c0_4], %3 {strides = array<i32>} : memref<8x128xf32, #tpu.memory_space<vmem>>, vector<8x128xf32>,
    return
  }
  func.func @transform_0(%arg0: i32) -> (i32, i32) {
    %c0_i32 = arith.constant 0 : i32
    %c0_i32_0 = arith.constant 0 : i32
    %c0_i32_1 = arith.constant 0 : i32
    return %c0_i32, %c0_i32_0 : i32, i32
  }
  func.func @transform_1(%arg0: i32) -> (i32, i32) {
    %c0_i32 = arith.constant 0 : i32
    %c0_i32_0 = arith.constant 0 : i32
    return %arg0, %c0_i32 : i32, i32
  }
  func.func @transform_2(%arg0: i32) -> (i32, i32) {
    %c0_i32 = arith.constant 0 : i32
    %c0_i32_0 = arith.constant 0 : i32
    return %arg0, %c0_i32 : i32, i32
  }
}

module attributes {stable_mosaic.version = 11 : i64} {
  func.func @_mm_stats_kernel(%arg0: i32, %arg1: memref<256x3xf32, #tpu.memory_space<vmem>>, %arg2: memref<256x1xf32, #tpu.memory_space<vmem>>, %arg3: memref<3x32xf32, #tpu.memory_space<vmem>>, %arg4: memref<1x32xf32, #tpu.memory_space<vmem>>, %arg5: memref<256x32xbf16, #tpu.memory_space<vmem>>, %arg6: memref<1x1x32xf32, #tpu.memory_space<vmem>>, %arg7: memref<1x1x32xf32, #tpu.memory_space<vmem>>) attributes {dimension_semantics = [#tpu.dimension_semantics<parallel>], iteration_bounds = array<i64: 2>, scalar_prefetch = 0 : i64, scratch_operands = 0 : i64, tpu.core_type = #tpu.core_type<tc>, window_params = [{transform_indices = @transform_0, window_bounds = array<i64: 256, 3>}, {transform_indices = @transform_1, window_bounds = array<i64: 256, 1>}, {pipeline_mode = #tpu.pipeline_mode<synchronous>, transform_indices = @transform_2, window_bounds = array<i64: 3, 32>}, {pipeline_mode = #tpu.pipeline_mode<synchronous>, transform_indices = @transform_3, window_bounds = array<i64: 1, 32>}, {transform_indices = @transform_4, window_bounds = array<i64: 256, 32>}, {transform_indices = @transform_5, window_bounds = array<i64: 1, 1, 32>}, {transform_indices = @transform_6, window_bounds = array<i64: 1, 1, 32>}]} {
    %c0 = arith.constant 0 : index
    %c0_0 = arith.constant 0 : index
    %0 = vector.load %arg1[%c0, %c0_0] : memref<256x3xf32, #tpu.memory_space<vmem>>, vector<256x3xf32>
    %c0_1 = arith.constant 0 : index
    %c0_2 = arith.constant 0 : index
    %1 = vector.load %arg3[%c0_1, %c0_2] : memref<3x32xf32, #tpu.memory_space<vmem>>, vector<3x32xf32>
    %2 = vector.extract_strided_slice %0 {offsets = [0, 0], sizes = [256, 1], strides = [1, 1]} : vector<256x3xf32> to vector<256x1xf32>
    %3 = vector.extract_strided_slice %1 {offsets = [0, 0], sizes = [1, 32], strides = [1, 1]} : vector<3x32xf32> to vector<1x32xf32>
    %4 = vector.broadcast %2 : vector<256x1xf32> to vector<256x32xf32>
    %5 = vector.broadcast %3 : vector<1x32xf32> to vector<256x32xf32>
    %6 = arith.mulf %4, %5 : vector<256x32xf32>
    %7 = vector.extract_strided_slice %0 {offsets = [0, 1], sizes = [256, 1], strides = [1, 1]} : vector<256x3xf32> to vector<256x1xf32>
    %8 = vector.extract_strided_slice %1 {offsets = [1, 0], sizes = [1, 32], strides = [1, 1]} : vector<3x32xf32> to vector<1x32xf32>
    %9 = vector.broadcast %7 : vector<256x1xf32> to vector<256x32xf32>
    %10 = vector.broadcast %8 : vector<1x32xf32> to vector<256x32xf32>
    %11 = arith.mulf %9, %10 : vector<256x32xf32>
    %12 = arith.addf %6, %11 : vector<256x32xf32>
    %13 = vector.extract_strided_slice %0 {offsets = [0, 2], sizes = [256, 1], strides = [1, 1]} : vector<256x3xf32> to vector<256x1xf32>
    %14 = vector.extract_strided_slice %1 {offsets = [2, 0], sizes = [1, 32], strides = [1, 1]} : vector<3x32xf32> to vector<1x32xf32>
    %15 = vector.broadcast %13 : vector<256x1xf32> to vector<256x32xf32>
    %16 = vector.broadcast %14 : vector<1x32xf32> to vector<256x32xf32>
    %17 = arith.mulf %15, %16 : vector<256x32xf32>
    %18 = arith.addf %12, %17 : vector<256x32xf32>
    %c0_3 = arith.constant 0 : index
    %c0_4 = arith.constant 0 : index
    %19 = vector.load %arg4[%c0_3, %c0_4] : memref<1x32xf32, #tpu.memory_space<vmem>>, vector<1x32xf32>
    %20 = vector.broadcast %19 : vector<1x32xf32> to vector<256x32xf32>
    %21 = arith.addf %18, %20 : vector<256x32xf32>
    %22 = arith.truncf %21 : vector<256x32xf32> to vector<256x32xbf16>
    %c0_5 = arith.constant 0 : index
    %c0_6 = arith.constant 0 : index
    %23 = vector.load %arg5[%c0_5, %c0_6] : memref<256x32xbf16, #tpu.memory_space<vmem>>, vector<256x32xbf16>
    tpu.vector_store %arg5[%c0_5, %c0_6], %22 {strides = array<i32>} : memref<256x32xbf16, #tpu.memory_space<vmem>>, vector<256x32xbf16>,
    %c0_7 = arith.constant 0 : index
    %c0_8 = arith.constant 0 : index
    %24 = vector.load %arg2[%c0_7, %c0_8] : memref<256x1xf32, #tpu.memory_space<vmem>>, vector<256x1xf32>
    %25 = vector.broadcast %24 : vector<256x1xf32> to vector<256x32xf32>
    %26 = arith.mulf %21, %25 : vector<256x32xf32>
    %cst = arith.constant dense<0.000000e+00> : vector<32xf32>
    %27 = vector.multi_reduction <add>, %26, %cst [0] : vector<256x32xf32> to vector<32xf32>
    %28 = vector.shape_cast %27 : vector<32xf32> to vector<1x32xf32>
    %29 = vector.shape_cast %28 : vector<1x32xf32> to vector<1x1x32xf32>
    %c0_9 = arith.constant 0 : index
    %c0_10 = arith.constant 0 : index
    %c0_11 = arith.constant 0 : index
    %30 = vector.load %arg6[%c0_9, %c0_10, %c0_11] : memref<1x1x32xf32, #tpu.memory_space<vmem>>, vector<1x1x32xf32>
    tpu.vector_store %arg6[%c0_9, %c0_10, %c0_11], %29 {strides = array<i32>} : memref<1x1x32xf32, #tpu.memory_space<vmem>>, vector<1x1x32xf32>,
    %31 = arith.mulf %26, %21 : vector<256x32xf32>
    %cst_12 = arith.constant dense<0.000000e+00> : vector<32xf32>
    %32 = vector.multi_reduction <add>, %31, %cst_12 [0] : vector<256x32xf32> to vector<32xf32>
    %33 = vector.shape_cast %32 : vector<32xf32> to vector<1x32xf32>
    %34 = vector.shape_cast %33 : vector<1x32xf32> to vector<1x1x32xf32>
    %c0_13 = arith.constant 0 : index
    %c0_14 = arith.constant 0 : index
    %c0_15 = arith.constant 0 : index
    %35 = vector.load %arg7[%c0_13, %c0_14, %c0_15] : memref<1x1x32xf32, #tpu.memory_space<vmem>>, vector<1x1x32xf32>
    tpu.vector_store %arg7[%c0_13, %c0_14, %c0_15], %34 {strides = array<i32>} : memref<1x1x32xf32, #tpu.memory_space<vmem>>, vector<1x1x32xf32>,
    return
  }
  func.func @transform_0(%arg0: i32) -> (i32, i32) {
    %c0_i32 = arith.constant 0 : i32
    %c0_i32_0 = arith.constant 0 : i32
    return %arg0, %c0_i32 : i32, i32
  }
  func.func @transform_1(%arg0: i32) -> (i32, i32) {
    %c0_i32 = arith.constant 0 : i32
    %c0_i32_0 = arith.constant 0 : i32
    return %arg0, %c0_i32 : i32, i32
  }
  func.func @transform_2(%arg0: i32) -> (i32, i32) {
    %c0_i32 = arith.constant 0 : i32
    %c0_i32_0 = arith.constant 0 : i32
    %c0_i32_1 = arith.constant 0 : i32
    return %c0_i32, %c0_i32_0 : i32, i32
  }
  func.func @transform_3(%arg0: i32) -> (i32, i32) {
    %c0_i32 = arith.constant 0 : i32
    %c0_i32_0 = arith.constant 0 : i32
    %c0_i32_1 = arith.constant 0 : i32
    return %c0_i32, %c0_i32_0 : i32, i32
  }
  func.func @transform_4(%arg0: i32) -> (i32, i32) {
    %c0_i32 = arith.constant 0 : i32
    %c0_i32_0 = arith.constant 0 : i32
    return %arg0, %c0_i32 : i32, i32
  }
  func.func @transform_5(%arg0: i32) -> (i32, i32, i32) {
    %c0_i32 = arith.constant 0 : i32
    %c0_i32_0 = arith.constant 0 : i32
    %c0_i32_1 = arith.constant 0 : i32
    return %arg0, %c0_i32, %c0_i32_0 : i32, i32, i32
  }
  func.func @transform_6(%arg0: i32) -> (i32, i32, i32) {
    %c0_i32 = arith.constant 0 : i32
    %c0_i32_0 = arith.constant 0 : i32
    %c0_i32_1 = arith.constant 0 : i32
    return %arg0, %c0_i32, %c0_i32_0 : i32, i32, i32
  }
}

</mosaic_0001>

<llo_original>
// kernel: tpu_custom_call.1
$region0: #{tpu_custom_call.1}
  #allocation0 [shape = 'u32[]', space=smem, size = 0x4, offset = 0x4, fixed_abs, tag = 'smem constant byte address 0x4 - core index']
  #allocation1 [shape = 'u32[144,128]{1,0:T(1,128)}', space=vmem, size = 0x12000, scoped, tag = 'internal scratch']
  %s0 = inlined_call_operand.hbm [shape: f32[1,128], index: 0, kind: input, shape index: {}]
  %s1 = inlined_call_operand.hbm [shape: f32[16,128], index: 1, kind: input, shape index: {}]
  %s2 = inlined_call_operand.hbm [shape: f32[16,128], index: 2, kind: output, shape index: {}]
  %s3 = sld [smem:[#allocation0]]
  $region49: #{tpu_custom_call.1} parent=0
    _
  %s5 = ssub.s32 1, %s3
  %s6 = scalar_select 0, %s5, %s3
  $region1: #{tpu_custom_call.1} parent=0
    #allocation2 [shape = 'u8[512]{0}', space=vmem, size = 0x400, scoped, tag = 'input window, operand 0, single buffered']
    #allocation3 [shape = 's32[2]{0}', space=sflag, size = 0x8, scoped, tag = 'scoped memory for tpu_custom_call.1']
    #allocation4 [shape = 's32[2]{0}', space=sflag, size = 0x8, scoped, tag = 'scoped memory for tpu_custom_call.1']
    #allocation5 [shape = 'u8[8192]{0}', space=vmem, size = 0x2000, scoped, tag = 'input window, operand 1']
    #allocation6 [shape = 's32[2]{0}', space=sflag, size = 0x8, scoped, tag = 'scoped memory for tpu_custom_call.1']
    #allocation7 [shape = 'u8[8192]{0}', space=vmem, size = 0x2000, scoped, tag = 'output window, operand 0']
    %7 = vsyncpa [#allocation3], 0
    %8 = vsyncpa [#allocation6], 0
    %s9 = scalar_lea.sflag [#allocation6], 1
    %10 = vsyncpa %s9, 0
    %11 = vsyncpa [#allocation4], 0
    %s12 = scalar_lea.sflag [#allocation4], 1
    %13 = vsyncpa %s12, 0
    loop: start=0, step=1, limit=4
    $region2: #{tpu_custom_call.1} parent=1 // loop_pre_header
      _
    $region3: #{tpu_custom_call.1} parent=1 // loop_header
      %s15 = sphi 0, %s19
      %p16 = scmp.ge.s32.totalorder %s15, 4
      %s23 = sphi 0, %s23
      %s25 = sphi 0, %s23
      %s26 = sphi 0, %s25
      %s40 = sphi 0, %s26
      %s46 = sphi 0, %s48
      %s49 = sphi 0, %s46
      %s50 = sphi 0, %s49
      %s66 = sphi 0, %s50
      %s72 = sphi 0, %s74
      %s75 = sphi 0, %s72
      %s76 = sphi 0, %s75
      %s92 = sphi 0, %s76
    $region4: #{tpu_custom_call.1} parent=1 // loop_header_branch
      %18 = sbr.rel (%p16) target = $region8
    $region5: #{tpu_custom_call.1} parent=1 // loop_body
      %s20 = ssub.s32 %s15, 1
      %s21 = ssub.s32 %s15, 2
      %s22 = sadd.s32 %s15, 1
      %s24 = sadd.s32 %s23, 1
      %p27 = scmp.eq.s32.totalorder %s15, 1
      %p28 = scmp.ne.s32.totalorder %s23, %s25
      %p29 = scmp.eq.s32.totalorder %s15, 0
      %p30 = por %p28, %p29
      %p31 = scmp.ne.s32.totalorder %s23, %s25
      %p32 = scmp.eq.s32.totalorder %s20, 1
      %p33 = por %p31, %p32
      %p34 = scmp.ne.s32.totalorder %s25, %s26
      %p35 = scmp.eq.s32.totalorder %s20, 0
      %p36 = por %p34, %p35
      %p37 = scmp.ne.s32.totalorder %s25, %s26
      %p38 = scmp.eq.s32.totalorder %s21, 1
      %p39 = por %p37, %p38
      %p41 = scmp.ne.s32.totalorder %s26, %s40
      %p42 = scmp.eq.s32.totalorder %s21, 0
      %p43 = por %p41, %p42
      %s44 = ssub.s32 %s15, %s22
      %p45 = scmp.eq.s32.totalorder %s44, 0
      %s47 = sadd.s32 %s46, 1
      %s48 = scalar_select %p45, %s46, %s47
      %p51 = pneg %p45
      %p52 = scmp.eq.s32.totalorder %s15, 1
      %p53 = por %p51, %p52
      %p54 = scmp.ne.s32.totalorder %s46, %s49
      %p55 = scmp.eq.s32.totalorder %s15, 0
      %p56 = por %p54, %p55
      %p57 = scmp.ne.s32.totalorder %s46, %s49
      %p58 = scmp.eq.s32.totalorder %s20, 1
      %p59 = por %p57, %p58
      %p60 = scmp.ne.s32.totalorder %s49, %s50
      %p61 = scmp.eq.s32.totalorder %s20, 0
      %p62 = por %p60, %p61
      %p63 = scmp.ne.s32.totalorder %s49, %s50
      %p64 = scmp.eq.s32.totalorder %s21, 1
      %p65 = por %p63, %p64
      %p67 = scmp.ne.s32.totalorder %s50, %s66
      %p68 = scmp.eq.s32.totalorder %s21, 0
      %p69 = por %p67, %p68
      %s70 = ssub.s32 %s15, %s22
      %p71 = scmp.eq.s32.totalorder %s70, 0
      %s73 = sadd.s32 %s72, 1
      %s74 = scalar_select %p71, %s72, %s73
      %p77 = pneg %p71
      %p78 = scmp.eq.s32.totalorder %s15, 1
      %p79 = por %p77, %p78
      %p80 = scmp.ne.s32.totalorder %s72, %s75
      %p81 = scmp.eq.s32.totalorder %s15, 0
      %p82 = por %p80, %p81
      %p83 = scmp.ne.s32.totalorder %s72, %s75
      %p84 = scmp.eq.s32.totalorder %s20, 1
      %p85 = por %p83, %p84
      %p86 = scmp.ne.s32.totalorder %s75, %s76
      %p87 = scmp.eq.s32.totalorder %s20, 0
      %p88 = por %p86, %p87
      %p89 = scmp.ne.s32.totalorder %s75, %s76
      %p90 = scmp.eq.s32.totalorder %s21, 1
      %p91 = por %p89, %p90
      %p93 = scmp.ne.s32.totalorder %s76, %s92
      %p94 = scmp.eq.s32.totalorder %s21, 0
      %p95 = por %p93, %p94
      %p96 = scmp.le.s32.totalorder 1, %s15
      %p97 = scmp.lt.s32.totalorder %s15, 3
      %p98 = pnand %p96, %p97
      %p99 = pneg %p98
      // Predicated region
      $region9: #{tpu_custom_call.1} parent=5 // pred_check
        _
      $region10: #{tpu_custom_call.1} parent=5 // pred_check_branch
        %101 = sbr.rel (%p98) target = $region12
      $region11: #{tpu_custom_call.1} parent=5 // pred_region
        %s102 = ssub.s32 %s15, 1
        // Predicated region
        $region13: #{tpu_custom_call.1} parent=11 // pred_check
          %p103 = pneg %p36
        $region14: #{tpu_custom_call.1} parent=11 // pred_check_branch
          %105 = sbr.rel (%p103) target = $region16
        $region15: #{tpu_custom_call.1} parent=11 // pred_region
          %s107 = ssub.s32 16, 16
          %108 = vsyncadd [#allocation3], %s107
          %s110 = sshll.u32 [#allocation2], 4
          %s111 = int_to_ptr.vmem [resolvable:$true] %s110
          %113 = dma.hbm_to_vmem [thread:$0]  %s0, 16, %s111, [#allocation3]
        $region16: #{tpu_custom_call.1} parent=11 // pred_fallthru
          _
      $region12: #{tpu_custom_call.1} parent=5 // pred_fallthru
        _
      %p114 = scmp.lt.s32.totalorder %s15, 2
      // Predicated region
      $region17: #{tpu_custom_call.1} parent=5 // pred_check
        %p115 = pneg %p114
      $region18: #{tpu_custom_call.1} parent=5 // pred_check_branch
        %117 = sbr.rel (%p115) target = $region20
      $region19: #{tpu_custom_call.1} parent=5 // pred_region
        // Predicated region
        $region21: #{tpu_custom_call.1} parent=19 // pred_check
          %p118 = pneg %p56
        $region22: #{tpu_custom_call.1} parent=19 // pred_check_branch
          %120 = sbr.rel (%p118) target = $region24
        $region23: #{tpu_custom_call.1} parent=19 // pred_region
          %s121 = sand.u32 %s46, 1
          %s122 = scalar_lea.sflag [#allocation6], %s121
          %s123 = sand.u32 %s46, 1
          %s124 = smul.addr %s123, 8
          %s125 = scalar_lea.vmem [#allocation5], %s124
          %s127 = ssub.s32 128, 128
          %128 = vsyncadd %s122, %s127
          %s129 = smul.addr %s15, 128
          %s130 = scalar_lea.hbm %s1, %s129
          %s132 = sshll.u32 %s125, 4
          %s133 = int_to_ptr.vmem [resolvable:$true] %s132
          %135 = dma.hbm_to_vmem [thread:$0]  %s130, 128, %s133, %s122
        $region24: #{tpu_custom_call.1} parent=19 // pred_fallthru
          _
      $region20: #{tpu_custom_call.1} parent=5 // pred_fallthru
        _
      %p136 = scmp.le.s32.totalorder 1, %s15
      %p137 = scmp.lt.s32.totalorder %s15, 3
      %p138 = pnand %p136, %p137
      %p139 = pneg %p138
      // Predicated region
      $region25: #{tpu_custom_call.1} parent=5 // pred_check
        _
      $region26: #{tpu_custom_call.1} parent=5 // pred_check_branch
        %141 = sbr.rel (%p138) target = $region28
      $region27: #{tpu_custom_call.1} parent=5 // pred_region
        %s142 = ssub.s32 %s15, 1
        // Predicated region
        $region29: #{tpu_custom_call.1} parent=27 // pred_check
          %p143 = pneg %p36
        $region30: #{tpu_custom_call.1} parent=27 // pred_check_branch
          %145 = sbr.rel (%p143) target = $region32
        $region31: #{tpu_custom_call.1} parent=27 // pred_region
          %146 = dma.done [#allocation3], 16
        $region32: #{tpu_custom_call.1} parent=27 // pred_fallthru
          _
        %s147 = sand.u32 %s49, 1
        %s148 = scalar_lea.sflag [#allocation6], %s147
        %s149 = sand.u32 %s49, 1
        %s150 = smul.addr %s149, 8
        %s151 = scalar_lea.vmem [#allocation5], %s150
        // Predicated region
        $region33: #{tpu_custom_call.1} parent=27 // pred_check
          %p152 = pneg %p62
        $region34: #{tpu_custom_call.1} parent=27 // pred_check_branch
          %154 = sbr.rel (%p152) target = $region36
        $region35: #{tpu_custom_call.1} parent=27 // pred_region
          %155 = dma.done %s148, 128
        $region36: #{tpu_custom_call.1} parent=27 // pred_fallthru
          _
        %p156 = pneg %p36
        %p157 = pneg %p33
        %s158 = sand.u32 %s49, 1
        %s159 = scalar_lea.sflag [#allocation6], %s158
        %s160 = sand.u32 %s49, 1
        %s161 = smul.addr %s160, 8
        %s162 = scalar_lea.vmem [#allocation5], %s161
        %p163 = pneg %p62
        %p164 = pneg %p59
        %p165 = pneg %p88
        %p166 = pneg %p85
        %s167 = sand.u32 %s75, 1
        %s168 = scalar_lea.sflag [#allocation4], %s167
        %s169 = sand.u32 %s75, 1
        %s170 = smul.addr %s169, 8
        %s171 = scalar_lea.vmem [#allocation7], %s170
        %v172 = vld [vmem:[%s151] sm:$0xff]
        %v173 = vld [vmem:[#allocation2] sm:$0x1]
        %v175 = vlaneseq
        %v176 = vshrl.u32 %v175, 7
        %v177 = vsub.s32 0, %v176
        %v178 = vrot.slane %v173, %v177
        %v180 = vadd.f32 %v172, %v178
        %181 = vst [vmem:[%s171] sm:$0xff] %v180
        %s182 = sand.u32 %s75, 1
        %s183 = scalar_lea.sflag [#allocation4], %s182
        %s184 = sand.u32 %s75, 1
        %s185 = smul.addr %s184, 8
        %s186 = scalar_lea.vmem [#allocation7], %s185
        // Predicated region
        $region37: #{tpu_custom_call.1} parent=27 // pred_check
          %p187 = pneg %p85
        $region38: #{tpu_custom_call.1} parent=27 // pred_check_branch
          %189 = sbr.rel (%p187) target = $region40
        $region39: #{tpu_custom_call.1} parent=27 // pred_region
          %s191 = ssub.s32 128, 128
          %192 = vsyncadd %s183, %s191
          %s193 = smul.addr %s20, 128
          %s194 = scalar_lea.hbm %s2, %s193
          %s196 = sshll.u32 %s186, 4
          %s197 = int_to_ptr.vmem [resolvable:$true] %s196
          %199 = dma.vmem_to_hbm [thread:$0]  %s197, 128, %s194, %s183
        $region40: #{tpu_custom_call.1} parent=27 // pred_fallthru
          _
      $region28: #{tpu_custom_call.1} parent=5 // pred_fallthru
        _
      %p200 = scmp.le.s32.totalorder 2, %s15
      // Predicated region
      $region41: #{tpu_custom_call.1} parent=5 // pred_check
        %p201 = pneg %p200
      $region42: #{tpu_custom_call.1} parent=5 // pred_check_branch
        %203 = sbr.rel (%p201) target = $region44
      $region43: #{tpu_custom_call.1} parent=5 // pred_region
        %s204 = ssub.s32 %s15, 2
        // Predicated region
        $region45: #{tpu_custom_call.1} parent=43 // pred_check
          %p205 = pneg %p91
        $region46: #{tpu_custom_call.1} parent=43 // pred_check_branch
          %207 = sbr.rel (%p205) target = $region48
        $region47: #{tpu_custom_call.1} parent=43 // pred_region
          %s208 = sand.u32 %s76, 1
          %s209 = scalar_lea.sflag [#allocation4], %s208
          %s210 = sand.u32 %s76, 1
          %s211 = smul.addr %s210, 8
          %s212 = scalar_lea.vmem [#allocation7], %s211
          %213 = dma.done %s209, 128
        $region48: #{tpu_custom_call.1} parent=43 // pred_fallthru
          _
      $region44: #{tpu_custom_call.1} parent=5 // pred_fallthru
        _
    $region6: #{tpu_custom_call.1} parent=1 // loop_footer
      %s19 = sadd.s32 1, %s15
    $region7: #{tpu_custom_call.1} parent=1 // loop_footer_branch
      %14 = sbr.rel target = $region3
    $region8: #{tpu_custom_call.1} parent=1 // loop_exit
      _
    %214 = vsyncpa [#allocation3], 1
    %s215 = scalar_lea.sflag [#allocation3], 1
    %216 = vsyncpa %s215, 1
    %217 = vsyncpa [#allocation6], 1
    %s218 = scalar_lea.sflag [#allocation6], 1
    %219 = vsyncpa %s218, 1
    %220 = vsyncpa [#allocation4], 1
    %s221 = scalar_lea.sflag [#allocation4], 1
    %222 = vsyncpa %s221, 1

// kernel: tpu_custom_call.1
$region0: #{tpu_custom_call.1}
  #allocation0 [shape = 'u32[]', space=smem, size = 0x4, offset = 0x4, fixed_abs, tag = 'smem constant byte address 0x4 - core index']
  #allocation1 [shape = 'u32[144,128]{1,0:T(1,128)}', space=vmem, size = 0x12000, scoped, tag = 'internal scratch']
  %s0 = inlined_call_operand.hbm [shape: f32[512,3], index: 0, kind: input, shape index: {}]
  %s1 = inlined_call_operand.hbm [shape: f32[512,1], index: 1, kind: input, shape index: {}]
  %s2 = inlined_call_operand.hbm [shape: f32[3,32], index: 2, kind: input, shape index: {}]
  %s3 = inlined_call_operand.hbm [shape: f32[1,32], index: 3, kind: input, shape index: {}]
  %s4 = inlined_call_operand.hbm [shape: bf16[512,32], index: 4, kind: output, shape index: {0}]
  %s5 = inlined_call_operand.hbm [shape: f32[2,1,32], index: 5, kind: output, shape index: {1}]
  %s6 = inlined_call_operand.hbm [shape: f32[2,1,32], index: 6, kind: output, shape index: {2}]
  %7 = xla_tuple %s4, %s5, %s6
  %s8 = sld [smem:[#allocation0]]
  $region81: #{tpu_custom_call.1} parent=0
    _
  %s10 = ssub.s32 1, %s8
  %s11 = scalar_select 0, %s10, %s8
  $region1: #{tpu_custom_call.1} parent=0
    #allocation2 [shape = 'u8[262144]{0}', space=vmem, size = 0x40000, scoped, tag = 'input window, operand 0']
    #allocation3 [shape = 's32[2]{0}', space=sflag, size = 0x8, scoped, tag = 'scoped memory for tpu_custom_call.1']
    #allocation4 [shape = 's32[2]{0}', space=sflag, size = 0x8, scoped, tag = 'scoped memory for tpu_custom_call.1']
    #allocation5 [shape = 'u8[262144]{0}', space=vmem, size = 0x40000, scoped, tag = 'input window, operand 1']
    #allocation6 [shape = 's32[2]{0}', space=sflag, size = 0x8, scoped, tag = 'scoped memory for tpu_custom_call.1']
    #allocation7 [shape = 'u8[2048]{0}', space=vmem, size = 0x800, scoped, tag = 'input window, operand 2, single buffered']
    #allocation8 [shape = 'u8[512]{0}', space=vmem, size = 0x400, scoped, tag = 'input window, operand 3, single buffered']
    #allocation9 [shape = 's32[1]{0}', space=sflag, size = 0x4, scoped, tag = 'scoped memory for tpu_custom_call.1']
    #allocation10 [shape = 'u8[131072]{0}', space=vmem, size = 0x20000, scoped, tag = 'output window, operand 0']
    #allocation11 [shape = 'u8[1024]{0}', space=vmem, size = 0x400, scoped, tag = 'output window, operand 1']
    #allocation12 [shape = 's32[2]{0}', space=sflag, size = 0x8, scoped, tag = 'scoped memory for tpu_custom_call.1']
    #allocation13 [shape = 'u8[1024]{0}', space=vmem, size = 0x400, scoped, tag = 'output window, operand 2']
    %12 = vsyncpa [#allocation3], 0
    %s13 = scalar_lea.sflag [#allocation3], 1
    %14 = vsyncpa %s13, 0
    %15 = vsyncpa [#allocation6], 0
    %s16 = scalar_lea.sflag [#allocation6], 1
    %17 = vsyncpa %s16, 0
    %18 = vsyncpa [#allocation9], 0
    %19 = vsyncpa [#allocation4], 0
    %s20 = scalar_lea.sflag [#allocation4], 1
    %21 = vsyncpa %s20, 0
    %22 = vsyncpa [#allocation12], 0
    %s23 = scalar_lea.sflag [#allocation12], 1
    %24 = vsyncpa %s23, 0
    loop: start=0, step=1, limit=4
    $region2: #{tpu_custom_call.1} parent=1 // loop_pre_header
      _
    $region3: #{tpu_custom_call.1} parent=1 // loop_header
      %s26 = sphi 0, %s30
      %p27 = scmp.ge.s32.totalorder %s26, 4
      %s36 = sphi 0, %s38
      %s39 = sphi 0, %s36
      %s40 = sphi 0, %s39
      %s56 = sphi 0, %s40
      %s62 = sphi 0, %s64
      %s65 = sphi 0, %s62
      %s66 = sphi 0, %s65
      %s82 = sphi 0, %s66
      %s86 = sphi 0, %s86
      %s88 = sphi 0, %s86
      %s89 = sphi 0, %s88
      %s103 = sphi 0, %s89
      %s107 = sphi 0, %s107
      %s109 = sphi 0, %s107
      %s110 = sphi 0, %s109
      %s124 = sphi 0, %s110
      %s130 = sphi 0, %s132
      %s133 = sphi 0, %s130
      %s134 = sphi 0, %s133
      %s150 = sphi 0, %s134
      %s156 = sphi 0, %s158
      %s159 = sphi 0, %s156
      %s160 = sphi 0, %s159
      %s176 = sphi 0, %s160
      %s182 = sphi 0, %s184
      %s185 = sphi 0, %s182
      %s186 = sphi 0, %s185
      %s202 = sphi 0, %s186
    $region4: #{tpu_custom_call.1} parent=1 // loop_header_branch
      %29 = sbr.rel (%p27) target = $region8
    $region5: #{tpu_custom_call.1} parent=1 // loop_body
      %s31 = ssub.s32 %s26, 1
      %s32 = ssub.s32 %s26, 2
      %s33 = sadd.s32 %s26, 1
      %s34 = ssub.s32 %s26, %s33
      %p35 = scmp.eq.s32.totalorder %s34, 0
      %s37 = sadd.s32 %s36, 1
      %s38 = scalar_select %p35, %s36, %s37
      %p41 = pneg %p35
      %p42 = scmp.eq.s32.totalorder %s26, 1
      %p43 = por %p41, %p42
      %p44 = scmp.ne.s32.totalorder %s36, %s39
      %p45 = scmp.eq.s32.totalorder %s26, 0
      %p46 = por %p44, %p45
      %p47 = scmp.ne.s32.totalorder %s36, %s39
      %p48 = scmp.eq.s32.totalorder %s31, 1
      %p49 = por %p47, %p48
      %p50 = scmp.ne.s32.totalorder %s39, %s40
      %p51 = scmp.eq.s32.totalorder %s31, 0
      %p52 = por %p50, %p51
      %p53 = scmp.ne.s32.totalorder %s39, %s40
      %p54 = scmp.eq.s32.totalorder %s32, 1
      %p55 = por %p53, %p54
      %p57 = scmp.ne.s32.totalorder %s40, %s56
      %p58 = scmp.eq.s32.totalorder %s32, 0
      %p59 = por %p57, %p58
      %s60 = ssub.s32 %s26, %s33
      %p61 = scmp.eq.s32.totalorder %s60, 0
      %s63 = sadd.s32 %s62, 1
      %s64 = scalar_select %p61, %s62, %s63
      %p67 = pneg %p61
      %p68 = scmp.eq.s32.totalorder %s26, 1
      %p69 = por %p67, %p68
      %p70 = scmp.ne.s32.totalorder %s62, %s65
      %p71 = scmp.eq.s32.totalorder %s26, 0
      %p72 = por %p70, %p71
      %p73 = scmp.ne.s32.totalorder %s62, %s65
      %p74 = scmp.eq.s32.totalorder %s31, 1
      %p75 = por %p73, %p74
      %p76 = scmp.ne.s32.totalorder %s65, %s66
      %p77 = scmp.eq.s32.totalorder %s31, 0
      %p78 = por %p76, %p77
      %p79 = scmp.ne.s32.totalorder %s65, %s66
      %p80 = scmp.eq.s32.totalorder %s32, 1
      %p81 = por %p79, %p80
      %p83 = scmp.ne.s32.totalorder %s66, %s82
      %p84 = scmp.eq.s32.totalorder %s32, 0
      %p85 = por %p83, %p84
      %s87 = sadd.s32 %s86, 1
      %p90 = scmp.eq.s32.totalorder %s26, 1
      %p91 = scmp.ne.s32.totalorder %s86, %s88
      %p92 = scmp.eq.s32.totalorder %s26, 0
      %p93 = por %p91, %p92
      %p94 = scmp.ne.s32.totalorder %s86, %s88
      %p95 = scmp.eq.s32.totalorder %s31, 1
      %p96 = por %p94, %p95
      %p97 = scmp.ne.s32.totalorder %s88, %s89
      %p98 = scmp.eq.s32.totalorder %s31, 0
      %p99 = por %p97, %p98
      %p100 = scmp.ne.s32.totalorder %s88, %s89
      %p101 = scmp.eq.s32.totalorder %s32, 1
      %p102 = por %p100, %p101
      %p104 = scmp.ne.s32.totalorder %s89, %s103
      %p105 = scmp.eq.s32.totalorder %s32, 0
      %p106 = por %p104, %p105
      %s108 = sadd.s32 %s107, 1
      %p111 = scmp.eq.s32.totalorder %s26, 1
      %p112 = scmp.ne.s32.totalorder %s107, %s109
      %p113 = scmp.eq.s32.totalorder %s26, 0
      %p114 = por %p112, %p113
      %p115 = scmp.ne.s32.totalorder %s107, %s109
      %p116 = scmp.eq.s32.totalorder %s31, 1
      %p117 = por %p115, %p116
      %p118 = scmp.ne.s32.totalorder %s109, %s110
      %p119 = scmp.eq.s32.totalorder %s31, 0
      %p120 = por %p118, %p119
      %p121 = scmp.ne.s32.totalorder %s109, %s110
      %p122 = scmp.eq.s32.totalorder %s32, 1
      %p123 = por %p121, %p122
      %p125 = scmp.ne.s32.totalorder %s110, %s124
      %p126 = scmp.eq.s32.totalorder %s32, 0
      %p127 = por %p125, %p126
      %s128 = ssub.s32 %s26, %s33
      %p129 = scmp.eq.s32.totalorder %s128, 0
      %s131 = sadd.s32 %s130, 1
      %s132 = scalar_select %p129, %s130, %s131
      %p135 = pneg %p129
      %p136 = scmp.eq.s32.totalorder %s26, 1
      %p137 = por %p135, %p136
      %p138 = scmp.ne.s32.totalorder %s130, %s133
      %p139 = scmp.eq.s32.totalorder %s26, 0
      %p140 = por %p138, %p139
      %p141 = scmp.ne.s32.totalorder %s130, %s133
      %p142 = scmp.eq.s32.totalorder %s31, 1
      %p143 = por %p141, %p142
      %p144 = scmp.ne.s32.totalorder %s133, %s134
      %p145 = scmp.eq.s32.totalorder %s31, 0
      %p146 = por %p144, %p145
      %p147 = scmp.ne.s32.totalorder %s133, %s134
      %p148 = scmp.eq.s32.totalorder %s32, 1
      %p149 = por %p147, %p148
      %p151 = scmp.ne.s32.totalorder %s134, %s150
      %p152 = scmp.eq.s32.totalorder %s32, 0
      %p153 = por %p151, %p152
      %s154 = ssub.s32 %s26, %s33
      %p155 = scmp.eq.s32.totalorder %s154, 0
      %s157 = sadd.s32 %s156, 1
      %s158 = scalar_select %p155, %s156, %s157
      %p161 = pneg %p155
      %p162 = scmp.eq.s32.totalorder %s26, 1
      %p163 = por %p161, %p162
      %p164 = scmp.ne.s32.totalorder %s156, %s159
      %p165 = scmp.eq.s32.totalorder %s26, 0
      %p166 = por %p164, %p165
      %p167 = scmp.ne.s32.totalorder %s156, %s159
      %p168 = scmp.eq.s32.totalorder %s31, 1
      %p169 = por %p167, %p168
      %p170 = scmp.ne.s32.totalorder %s159, %s160
      %p171 = scmp.eq.s32.totalorder %s31, 0
      %p172 = por %p170, %p171
      %p173 = scmp.ne.s32.totalorder %s159, %s160
      %p174 = scmp.eq.s32.totalorder %s32, 1
      %p175 = por %p173, %p174
      %p177 = scmp.ne.s32.totalorder %s160, %s176
      %p178 = scmp.eq.s32.totalorder %s32, 0
      %p179 = por %p177, %p178
      %s180 = ssub.s32 %s26, %s33
      %p181 = scmp.eq.s32.totalorder %s180, 0
      %s183 = sadd.s32 %s182, 1
      %s184 = scalar_select %p181, %s182, %s183
      %p187 = pneg %p181
      %p188 = scmp.eq.s32.totalorder %s26, 1
      %p189 = por %p187, %p188
      %p190 = scmp.ne.s32.totalorder %s182, %s185
      %p191 = scmp.eq.s32.totalorder %s26, 0
      %p192 = por %p190, %p191
      %p193 = scmp.ne.s32.totalorder %s182, %s185
      %p194 = scmp.eq.s32.totalorder %s31, 1
      %p195 = por %p193, %p194
      %p196 = scmp.ne.s32.totalorder %s185, %s186
      %p197 = scmp.eq.s32.totalorder %s31, 0
      %p198 = por %p196, %p197
      %p199 = scmp.ne.s32.totalorder %s185, %s186
      %p200 = scmp.eq.s32.totalorder %s32, 1
      %p201 = por %p199, %p200
      %p203 = scmp.ne.s32.totalorder %s186, %s202
      %p204 = scmp.eq.s32.totalorder %s32, 0
      %p205 = por %p203, %p204
      %p206 = scmp.le.s32.totalorder 1, %s26
      %p207 = scmp.lt.s32.totalorder %s26, 3
      %p208 = pnand %p206, %p207
      %p209 = pneg %p208
      // Predicated region
      $region9: #{tpu_custom_call.1} parent=5 // pred_check
        _
      $region10: #{tpu_custom_call.1} parent=5 // pred_check_branch
        %211 = sbr.rel (%p208) target = $region12
      $region11: #{tpu_custom_call.1} parent=5 // pred_region
        %s212 = ssub.s32 %s26, 1
        // Predicated region
        $region13: #{tpu_custom_call.1} parent=11 // pred_check
          %p213 = pneg %p99
        $region14: #{tpu_custom_call.1} parent=11 // pred_check_branch
          %215 = sbr.rel (%p213) target = $region16
        $region15: #{tpu_custom_call.1} parent=11 // pred_region
          %s217 = ssub.s32 64, 64
          %218 = vsyncadd [#allocation6], %s217
          %s220 = sshll.u32 [#allocation7], 4
          %s221 = int_to_ptr.vmem [resolvable:$true] %s220
          %223 = dma.hbm_to_vmem [thread:$0]  %s2, 64, %s221, [#allocation6]
        $region16: #{tpu_custom_call.1} parent=11 // pred_fallthru
          _
        // Predicated region
        $region17: #{tpu_custom_call.1} parent=11 // pred_check
          %p224 = pneg %p120
        $region18: #{tpu_custom_call.1} parent=11 // pred_check_branch
          %226 = sbr.rel (%p224) target = $region20
        $region19: #{tpu_custom_call.1} parent=11 // pred_region
          %s228 = ssub.s32 16, 16
          %229 = vsyncadd [#allocation9], %s228
          %s231 = sshll.u32 [#allocation8], 4
          %s232 = int_to_ptr.vmem [resolvable:$true] %s231
          %234 = dma.hbm_to_vmem [thread:$0]  %s3, 16, %s232, [#allocation9]
        $region20: #{tpu_custom_call.1} parent=11 // pred_fallthru
          _
      $region12: #{tpu_custom_call.1} parent=5 // pred_fallthru
        _
      %p235 = scmp.lt.s32.totalorder %s26, 2
      // Predicated region
      $region21: #{tpu_custom_call.1} parent=5 // pred_check
        %p236 = pneg %p235
      $region22: #{tpu_custom_call.1} parent=5 // pred_check_branch
        %238 = sbr.rel (%p236) target = $region24
      $region23: #{tpu_custom_call.1} parent=5 // pred_region
        // Predicated region
        $region25: #{tpu_custom_call.1} parent=23 // pred_check
          %p239 = pneg %p46
        $region26: #{tpu_custom_call.1} parent=23 // pred_check_branch
          %241 = sbr.rel (%p239) target = $region28
        $region27: #{tpu_custom_call.1} parent=23 // pred_region
          %s242 = sand.u32 %s36, 1
          %s243 = scalar_lea.sflag [#allocation3], %s242
          %s244 = sand.u32 %s36, 1
          %s245 = smul.addr %s244, 256
          %s246 = scalar_lea.vmem [#allocation2], %s245
          %s247 = smul.u32 32, %s26
          %s249 = ssub.s32 4096, 4096
          %250 = vsyncadd %s243, %s249
          %s251 = smul.addr %s247, 128
          %s252 = scalar_lea.hbm %s0, %s251
          %s253 = sshll.u32 %s246, 4
          %s254 = int_to_ptr.vmem [resolvable:$true] %s253
          %259 = dma.hbm_to_vmem [thread:$0]  %s252, 4096, %s254, %s243, 128, 128, 8
        $region28: #{tpu_custom_call.1} parent=23 // pred_fallthru
          _
        // Predicated region
        $region29: #{tpu_custom_call.1} parent=23 // pred_check
          %p260 = pneg %p72
        $region30: #{tpu_custom_call.1} parent=23 // pred_check_branch
          %262 = sbr.rel (%p260) target = $region32
        $region31: #{tpu_custom_call.1} parent=23 // pred_region
          %s263 = sand.u32 %s26, 1
          %s264 = scalar_lea.sflag [#allocation6], %s263
          %s265 = sand.u32 %s62, 1
          %s266 = smul.addr %s265, 256
          %s267 = scalar_lea.vmem [#allocation5], %s266
          %s268 = smul.u32 32, %s26
          %s270 = ssub.s32 4096, 4096
          %271 = vsyncadd %s264, %s270
          %s272 = smul.addr %s268, 128
          %s273 = scalar_lea.hbm %s1, %s272
          %s274 = sshll.u32 %s267, 4
          %s275 = int_to_ptr.vmem [resolvable:$true] %s274
          %280 = dma.hbm_to_vmem [thread:$0]  %s273, 4096, %s275, %s264, 128, 128, 8
        $region32: #{tpu_custom_call.1} parent=23 // pred_fallthru
          _
      $region24: #{tpu_custom_call.1} parent=5 // pred_fallthru
        _
      %p281 = scmp.le.s32.totalorder 1, %s26
      %p282 = scmp.lt.s32.totalorder %s26, 3
      %p283 = pnand %p281, %p282
      %p284 = pneg %p283
      // Predicated region
      $region33: #{tpu_custom_call.1} parent=5 // pred_check
        _
      $region34: #{tpu_custom_call.1} parent=5 // pred_check_branch
        %286 = sbr.rel (%p283) target = $region36
      $region35: #{tpu_custom_call.1} parent=5 // pred_region
        %s287 = ssub.s32 %s26, 1
        %s288 = sand.u32 %s39, 1
        %s289 = scalar_lea.sflag [#allocation3], %s288
        %s290 = sand.u32 %s39, 1
        %s291 = smul.addr %s290, 256
        %s292 = scalar_lea.vmem [#allocation2], %s291
        // Predicated region
        $region37: #{tpu_custom_call.1} parent=35 // pred_check
          %p293 = pneg %p52
        $region38: #{tpu_custom_call.1} parent=35 // pred_check_branch
          %295 = sbr.rel (%p293) target = $region40
        $region39: #{tpu_custom_call.1} parent=35 // pred_region
          %296 = dma.done %s289, 4096
        $region40: #{tpu_custom_call.1} parent=35 // pred_fallthru
          _
        %s297 = sand.u32 %s31, 1
        %s298 = scalar_lea.sflag [#allocation6], %s297
        %s299 = sand.u32 %s65, 1
        %s300 = smul.addr %s299, 256
        %s301 = scalar_lea.vmem [#allocation5], %s300
        // Predicated region
        $region41: #{tpu_custom_call.1} parent=35 // pred_check
          %p302 = pneg %p78
        $region42: #{tpu_custom_call.1} parent=35 // pred_check_branch
          %304 = sbr.rel (%p302) target = $region44
        $region43: #{tpu_custom_call.1} parent=35 // pred_region
          %305 = dma.done %s298, 4096
        $region44: #{tpu_custom_call.1} parent=35 // pred_fallthru
          _
        // Predicated region
        $region45: #{tpu_custom_call.1} parent=35 // pred_check
          %p306 = pneg %p99
        $region46: #{tpu_custom_call.1} parent=35 // pred_check_branch
          %308 = sbr.rel (%p306) target = $region48
        $region47: #{tpu_custom_call.1} parent=35 // pred_region
          %309 = dma.done [#allocation6], 64
        $region48: #{tpu_custom_call.1} parent=35 // pred_fallthru
          _
        // Predicated region
        $region49: #{tpu_custom_call.1} parent=35 // pred_check
          %p310 = pneg %p120
        $region50: #{tpu_custom_call.1} parent=35 // pred_check_branch
          %312 = sbr.rel (%p310) target = $region52
        $region51: #{tpu_custom_call.1} parent=35 // pred_region
          %313 = dma.done [#allocation9], 16
        $region52: #{tpu_custom_call.1} parent=35 // pred_fallthru
          _
        %s314 = sand.u32 %s39, 1
        %s315 = scalar_lea.sflag [#allocation3], %s314
        %s316 = sand.u32 %s39, 1
        %s317 = smul.addr %s316, 256
        %s318 = scalar_lea.vmem [#allocation2], %s317
        %p319 = pneg %p52
        %p320 = pneg %p49
        %s321 = sand.u32 %s31, 1
        %s322 = scalar_lea.sflag [#allocation6], %s321
        %s323 = sand.u32 %s65, 1
        %s324 = smul.addr %s323, 256
        %s325 = scalar_lea.vmem [#allocation5], %s324
        %p326 = pneg %p78
        %p327 = pneg %p75
        %p328 = pneg %p99
        %p329 = pneg %p96
        %p330 = pneg %p120
        %p331 = pneg %p117
        %p332 = pneg %p146
        %p333 = pneg %p143
        %s334 = sand.u32 %s133, 1
        %s335 = scalar_lea.sflag [#allocation4], %s334
        %s336 = sand.u32 %s133, 1
        %s337 = smul.addr %s336, 128
        %s338 = scalar_lea.vmem [#allocation10], %s337
        %p339 = pneg %p172
        %p340 = pneg %p169
        %s341 = sand.u32 %s31, 1
        %s342 = scalar_lea.sflag [#allocation12], %s341
        %s343 = sand.u32 %s159, 1
        %s344 = scalar_lea.vmem [#allocation11], %s343
        %p345 = pneg %p198
        %p346 = pneg %p195
        %s347 = sand.u32 %s31, 1
        %s348 = scalar_lea.sflag [#allocation12], %s347
        %s349 = sand.u32 %s185, 1
        %s350 = scalar_lea.vmem [#allocation13], %s349
        %s351 = smul.u32 32, %s31
        %s352 = smul.u32 32, %s31
        %s353 = smul.u32 32, %s31
        %v354 = vld [vmem:[%s292] sm:$0xff]
        %v355 = vld [vmem:[%s292 + $0x8] sm:$0xff]
        %v356 = vld [vmem:[%s292 + $0x10] sm:$0xff]
        %v357 = vld [vmem:[%s292 + $0x18] sm:$0xff]
        %v358 = vld [vmem:[%s292 + $0x20] sm:$0xff]
        %v359 = vld [vmem:[%s292 + $0x28] sm:$0xff]
        %v360 = vld [vmem:[%s292 + $0x30] sm:$0xff]
        %v361 = vld [vmem:[%s292 + $0x38] sm:$0xff]
        %v362 = vld [vmem:[%s292 + $0x40] sm:$0xff]
        %v363 = vld [vmem:[%s292 + $0x48] sm:$0xff]
        %v364 = vld [vmem:[%s292 + $0x50] sm:$0xff]
        %v365 = vld [vmem:[%s292 + $0x58] sm:$0xff]
        %v366 = vld [vmem:[%s292 + $0x60] sm:$0xff]
        %v367 = vld [vmem:[%s292 + $0x68] sm:$0xff]
        %v368 = vld [vmem:[%s292 + $0x70] sm:$0xff]
        %v369 = vld [vmem:[%s292 + $0x78] sm:$0xff]
        %v370 = vld [vmem:[%s292 + $0x80] sm:$0xff]
        %v371 = vld [vmem:[%s292 + $0x88] sm:$0xff]
        %v372 = vld [vmem:[%s292 + $0x90] sm:$0xff]
        %v373 = vld [vmem:[%s292 + $0x98] sm:$0xff]
        %v374 = vld [vmem:[%s292 + $0xa0] sm:$0xff]
        %v375 = vld [vmem:[%s292 + $0xa8] sm:$0xff]
        %v376 = vld [vmem:[%s292 + $0xb0] sm:$0xff]
        %v377 = vld [vmem:[%s292 + $0xb8] sm:$0xff]
        %v378 = vld [vmem:[%s292 + $0xc0] sm:$0xff]
        %v379 = vld [vmem:[%s292 + $0xc8] sm:$0xff]
        %v380 = vld [vmem:[%s292 + $0xd0] sm:$0xff]
        %v381 = vld [vmem:[%s292 + $0xd8] sm:$0xff]
        %v382 = vld [vmem:[%s292 + $0xe0] sm:$0xff]
        %v383 = vld [vmem:[%s292 + $0xe8] sm:$0xff]
        %v384 = vld [vmem:[%s292 + $0xf0] sm:$0xff]
        %v385 = vld [vmem:[%s292 + $0xf8] sm:$0xff]
        %v386 = vld [vmem:[#allocation7] sm:$0x7]
        %388 = vset.pattern.permute.xlu0 0
        %389 = vperm.xlu0 %388, %v354
        %v390 = vpop.permute.xlu0 %389
        %393 = vset.pattern.permute.xlu0 0
        %394 = vperm.xlu0 %393, %v355
        %v395 = vpop.permute.xlu0 %394
        %398 = vset.pattern.permute.xlu0 0
        %399 = vperm.xlu0 %398, %v356
        %v400 = vpop.permute.xlu0 %399
        %403 = vset.pattern.permute.xlu0 0
        %404 = vperm.xlu0 %403, %v357
        %v405 = vpop.permute.xlu0 %404
        %408 = vset.pattern.permute.xlu0 0
        %409 = vperm.xlu0 %408, %v358
        %v410 = vpop.permute.xlu0 %409
        %413 = vset.pattern.permute.xlu0 0
        %414 = vperm.xlu0 %413, %v359
        %v415 = vpop.permute.xlu0 %414
        %418 = vset.pattern.permute.xlu0 0
        %419 = vperm.xlu0 %418, %v360
        %v420 = vpop.permute.xlu0 %419
        %423 = vset.pattern.permute.xlu0 0
        %424 = vperm.xlu0 %423, %v361
        %v425 = vpop.permute.xlu0 %424
        %428 = vset.pattern.permute.xlu0 0
        %429 = vperm.xlu0 %428, %v362
        %v430 = vpop.permute.xlu0 %429
        %433 = vset.pattern.permute.xlu0 0
        %434 = vperm.xlu0 %433, %v363
        %v435 = vpop.permute.xlu0 %434
        %438 = vset.pattern.permute.xlu0 0
        %439 = vperm.xlu0 %438, %v364
        %v440 = vpop.permute.xlu0 %439
        %443 = vset.pattern.permute.xlu0 0
        %444 = vperm.xlu0 %443, %v365
        %v445 = vpop.permute.xlu0 %444
        %448 = vset.pattern.permute.xlu0 0
        %449 = vperm.xlu0 %448, %v366
        %v450 = vpop.permute.xlu0 %449
        %453 = vset.pattern.permute.xlu0 0
        %454 = vperm.xlu0 %453, %v367
        %v455 = vpop.permute.xlu0 %454
        %458 = vset.pattern.permute.xlu0 0
        %459 = vperm.xlu0 %458, %v368
        %v460 = vpop.permute.xlu0 %459
        %463 = vset.pattern.permute.xlu0 0
        %464 = vperm.xlu0 %463, %v369
        %v465 = vpop.permute.xlu0 %464
        %468 = vset.pattern.permute.xlu0 0
        %469 = vperm.xlu0 %468, %v370
        %v470 = vpop.permute.xlu0 %469
        %473 = vset.pattern.permute.xlu0 0
        %474 = vperm.xlu0 %473, %v371
        %v475 = vpop.permute.xlu0 %474
        %478 = vset.pattern.permute.xlu0 0
        %479 = vperm.xlu0 %478, %v372
        %v480 = vpop.permute.xlu0 %479
        %483 = vset.pattern.permute.xlu0 0
        %484 = vperm.xlu0 %483, %v373
        %v485 = vpop.permute.xlu0 %484
        %488 = vset.pattern.permute.xlu0 0
        %489 = vperm.xlu0 %488, %v374
        %v490 = vpop.permute.xlu0 %489
        %493 = vset.pattern.permute.xlu0 0
        %494 = vperm.xlu0 %493, %v375
        %v495 = vpop.permute.xlu0 %494
        %498 = vset.pattern.permute.xlu0 0
        %499 = vperm.xlu0 %498, %v376
        %v500 = vpop.permute.xlu0 %499
        %503 = vset.pattern.permute.xlu0 0
        %504 = vperm.xlu0 %503, %v377
        %v505 = vpop.permute.xlu0 %504
        %508 = vset.pattern.permute.xlu0 0
        %509 = vperm.xlu0 %508, %v378
        %v510 = vpop.permute.xlu0 %509
        %513 = vset.pattern.permute.xlu0 0
        %514 = vperm.xlu0 %513, %v379
        %v515 = vpop.permute.xlu0 %514
        %518 = vset.pattern.permute.xlu0 0
        %519 = vperm.xlu0 %518, %v380
        %v520 = vpop.permute.xlu0 %519
        %523 = vset.pattern.permute.xlu0 0
        %524 = vperm.xlu0 %523, %v381
        %v525 = vpop.permute.xlu0 %524
        %528 = vset.pattern.permute.xlu0 0
        %529 = vperm.xlu0 %528, %v382
        %v530 = vpop.permute.xlu0 %529
        %533 = vset.pattern.permute.xlu0 0
        %534 = vperm.xlu0 %533, %v383
        %v535 = vpop.permute.xlu0 %534
        %538 = vset.pattern.permute.xlu0 0
        %539 = vperm.xlu0 %538, %v384
        %v540 = vpop.permute.xlu0 %539
        %543 = vset.pattern.permute.xlu0 0
        %544 = vperm.xlu0 %543, %v385
        %v545 = vpop.permute.xlu0 %544
        %v547 = vlaneseq
        %v548 = vshrl.u32 %v547, 7
        %v549 = vsub.s32 0, %v548
        %v550 = vrot.slane %v386, %v549
        %v551 = vmul.f32 %v390, %v550
        %v552 = vmul.f32 %v395, %v550
        %v553 = vmul.f32 %v400, %v550
        %v554 = vmul.f32 %v405, %v550
        %v555 = vmul.f32 %v410, %v550
        %v556 = vmul.f32 %v415, %v550
        %v557 = vmul.f32 %v420, %v550
        %v558 = vmul.f32 %v425, %v550
        %v559 = vmul.f32 %v430, %v550
        %v560 = vmul.f32 %v435, %v550
        %v561 = vmul.f32 %v440, %v550
        %v562 = vmul.f32 %v445, %v550
        %v563 = vmul.f32 %v450, %v550
        %v564 = vmul.f32 %v455, %v550
        %v565 = vmul.f32 %v460, %v550
        %v566 = vmul.f32 %v465, %v550
        %v567 = vmul.f32 %v470, %v550
        %v568 = vmul.f32 %v475, %v550
        %v569 = vmul.f32 %v480, %v550
        %v570 = vmul.f32 %v485, %v550
        %v571 = vmul.f32 %v490, %v550
        %v572 = vmul.f32 %v495, %v550
        %v573 = vmul.f32 %v500, %v550
        %v574 = vmul.f32 %v505, %v550
        %v575 = vmul.f32 %v510, %v550
        %v576 = vmul.f32 %v515, %v550
        %v577 = vmul.f32 %v520, %v550
        %v578 = vmul.f32 %v525, %v550
        %v579 = vmul.f32 %v530, %v550
        %v580 = vmul.f32 %v535, %v550
        %v581 = vmul.f32 %v540, %v550
        %v582 = vmul.f32 %v545, %v550
        %583 = vset.pattern.permute.xlu0 1
        %584 = vperm.xlu0 %583, %v354
        %v585 = vpop.permute.xlu0 %584
        %587 = vset.pattern.permute.xlu0 1
        %588 = vperm.xlu0 %587, %v355
        %v589 = vpop.permute.xlu0 %588
        %591 = vset.pattern.permute.xlu0 1
        %592 = vperm.xlu0 %591, %v356
        %v593 = vpop.permute.xlu0 %592
        %595 = vset.pattern.permute.xlu0 1
        %596 = vperm.xlu0 %595, %v357
        %v597 = vpop.permute.xlu0 %596
        %599 = vset.pattern.permute.xlu0 1
        %600 = vperm.xlu0 %599, %v358
        %v601 = vpop.permute.xlu0 %600
        %603 = vset.pattern.permute.xlu0 1
        %604 = vperm.xlu0 %603, %v359
        %v605 = vpop.permute.xlu0 %604
        %607 = vset.pattern.permute.xlu0 1
        %608 = vperm.xlu0 %607, %v360
        %v609 = vpop.permute.xlu0 %608
        %611 = vset.pattern.permute.xlu0 1
        %612 = vperm.xlu0 %611, %v361
        %v613 = vpop.permute.xlu0 %612
        %615 = vset.pattern.permute.xlu0 1
        %616 = vperm.xlu0 %615, %v362
        %v617 = vpop.permute.xlu0 %616
        %619 = vset.pattern.permute.xlu0 1
        %620 = vperm.xlu0 %619, %v363
        %v621 = vpop.permute.xlu0 %620
        %623 = vset.pattern.permute.xlu0 1
        %624 = vperm.xlu0 %623, %v364
        %v625 = vpop.permute.xlu0 %624
        %627 = vset.pattern.permute.xlu0 1
        %628 = vperm.xlu0 %627, %v365
        %v629 = vpop.permute.xlu0 %628
        %631 = vset.pattern.permute.xlu0 1
        %632 = vperm.xlu0 %631, %v366
        %v633 = vpop.permute.xlu0 %632
        %635 = vset.pattern.permute.xlu0 1
        %636 = vperm.xlu0 %635, %v367
        %v637 = vpop.permute.xlu0 %636
        %639 = vset.pattern.permute.xlu0 1
        %640 = vperm.xlu0 %639, %v368
        %v641 = vpop.permute.xlu0 %640
        %643 = vset.pattern.permute.xlu0 1
        %644 = vperm.xlu0 %643, %v369
        %v645 = vpop.permute.xlu0 %644
        %647 = vset.pattern.permute.xlu0 1
        %648 = vperm.xlu0 %647, %v370
        %v649 = vpop.permute.xlu0 %648
        %651 = vset.pattern.permute.xlu0 1
        %652 = vperm.xlu0 %651, %v371
        %v653 = vpop.permute.xlu0 %652
        %655 = vset.pattern.permute.xlu0 1
        %656 = vperm.xlu0 %655, %v372
        %v657 = vpop.permute.xlu0 %656
        %659 = vset.pattern.permute.xlu0 1
        %660 = vperm.xlu0 %659, %v373
        %v661 = vpop.permute.xlu0 %660
        %663 = vset.pattern.permute.xlu0 1
        %664 = vperm.xlu0 %663, %v374
        %v665 = vpop.permute.xlu0 %664
        %667 = vset.pattern.permute.xlu0 1
        %668 = vperm.xlu0 %667, %v375
        %v669 = vpop.permute.xlu0 %668
        %671 = vset.pattern.permute.xlu0 1
        %672 = vperm.xlu0 %671, %v376
        %v673 = vpop.permute.xlu0 %672
        %675 = vset.pattern.permute.xlu0 1
        %676 = vperm.xlu0 %675, %v377
        %v677 = vpop.permute.xlu0 %676
        %679 = vset.pattern.permute.xlu0 1
        %680 = vperm.xlu0 %679, %v378
        %v681 = vpop.permute.xlu0 %680
        %683 = vset.pattern.permute.xlu0 1
        %684 = vperm.xlu0 %683, %v379
        %v685 = vpop.permute.xlu0 %684
        %687 = vset.pattern.permute.xlu0 1
        %688 = vperm.xlu0 %687, %v380
        %v689 = vpop.permute.xlu0 %688
        %691 = vset.pattern.permute.xlu0 1
        %692 = vperm.xlu0 %691, %v381
        %v693 = vpop.permute.xlu0 %692
        %695 = vset.pattern.permute.xlu0 1
        %696 = vperm.xlu0 %695, %v382
        %v697 = vpop.permute.xlu0 %696
        %699 = vset.pattern.permute.xlu0 1
        %700 = vperm.xlu0 %699, %v383
        %v701 = vpop.permute.xlu0 %700
        %703 = vset.pattern.permute.xlu0 1
        %704 = vperm.xlu0 %703, %v384
        %v705 = vpop.permute.xlu0 %704
        %707 = vset.pattern.permute.xlu0 1
        %708 = vperm.xlu0 %707, %v385
        %v709 = vpop.permute.xlu0 %708
        %v711 = vlaneseq
        %v712 = vshrl.u32 %v711, 7
        %v713 = vsub.s32 1, %v712
        %v714 = vrot.slane %v386, %v713
        %v715 = vmul.f32 %v585, %v714
        %v716 = vmul.f32 %v589, %v714
        %v717 = vmul.f32 %v593, %v714
        %v718 = vmul.f32 %v597, %v714
        %v719 = vmul.f32 %v601, %v714
        %v720 = vmul.f32 %v605, %v714
        %v721 = vmul.f32 %v609, %v714
        %v722 = vmul.f32 %v613, %v714
        %v723 = vmul.f32 %v617, %v714
        %v724 = vmul.f32 %v621, %v714
        %v725 = vmul.f32 %v625, %v714
        %v726 = vmul.f32 %v629, %v714
        %v727 = vmul.f32 %v633, %v714
        %v728 = vmul.f32 %v637, %v714
        %v729 = vmul.f32 %v641, %v714
        %v730 = vmul.f32 %v645, %v714
        %v731 = vmul.f32 %v649, %v714
        %v732 = vmul.f32 %v653, %v714
        %v733 = vmul.f32 %v657, %v714
        %v734 = vmul.f32 %v661, %v714
        %v735 = vmul.f32 %v665, %v714
        %v736 = vmul.f32 %v669, %v714
        %v737 = vmul.f32 %v673, %v714
        %v738 = vmul.f32 %v677, %v714
        %v739 = vmul.f32 %v681, %v714
        %v740 = vmul.f32 %v685, %v714
        %v741 = vmul.f32 %v689, %v714
        %v742 = vmul.f32 %v693, %v714
        %v743 = vmul.f32 %v697, %v714
        %v744 = vmul.f32 %v701, %v714
        %v745 = vmul.f32 %v705, %v714
        %v746 = vmul.f32 %v709, %v714
        %v747 = vadd.f32 %v551, %v715
        %v748 = vadd.f32 %v552, %v716
        %v749 = vadd.f32 %v553, %v717
        %v750 = vadd.f32 %v554, %v718
        %v751 = vadd.f32 %v555, %v719
        %v752 = vadd.f32 %v556, %v720
        %v753 = vadd.f32 %v557, %v721
        %v754 = vadd.f32 %v558, %v722
        %v755 = vadd.f32 %v559, %v723
        %v756 = vadd.f32 %v560, %v724
        %v757 = vadd.f32 %v561, %v725
        %v758 = vadd.f32 %v562, %v726
        %v759 = vadd.f32 %v563, %v727
        %v760 = vadd.f32 %v564, %v728
        %v761 = vadd.f32 %v565, %v729
        %v762 = vadd.f32 %v566, %v730
        %v763 = vadd.f32 %v567, %v731
        %v764 = vadd.f32 %v568, %v732
        %v765 = vadd.f32 %v569, %v733
        %v766 = vadd.f32 %v570, %v734
        %v767 = vadd.f32 %v571, %v735
        %v768 = vadd.f32 %v572, %v736
        %v769 = vadd.f32 %v573, %v737
        %v770 = vadd.f32 %v574, %v738
        %v771 = vadd.f32 %v575, %v739
        %v772 = vadd.f32 %v576, %v740
        %v773 = vadd.f32 %v577, %v741
        %v774 = vadd.f32 %v578, %v742
        %v775 = vadd.f32 %v579, %v743
        %v776 = vadd.f32 %v580, %v744
        %v777 = vadd.f32 %v581, %v745
        %v778 = vadd.f32 %v582, %v746
        %779 = vset.pattern.permute.xlu0 2
        %780 = vperm.xlu0 %779, %v354
        %v781 = vpop.permute.xlu0 %780
        %783 = vset.pattern.permute.xlu0 2
        %784 = vperm.xlu0 %783, %v355
        %v785 = vpop.permute.xlu0 %784
        %787 = vset.pattern.permute.xlu0 2
        %788 = vperm.xlu0 %787, %v356
        %v789 = vpop.permute.xlu0 %788
        %791 = vset.pattern.permute.xlu0 2
        %792 = vperm.xlu0 %791, %v357
        %v793 = vpop.permute.xlu0 %792
        %795 = vset.pattern.permute.xlu0 2
        %796 = vperm.xlu0 %795, %v358
        %v797 = vpop.permute.xlu0 %796
        %799 = vset.pattern.permute.xlu0 2
        %800 = vperm.xlu0 %799, %v359
        %v801 = vpop.permute.xlu0 %800
        %803 = vset.pattern.permute.xlu0 2
        %804 = vperm.xlu0 %803, %v360
        %v805 = vpop.permute.xlu0 %804
        %807 = vset.pattern.permute.xlu0 2
        %808 = vperm.xlu0 %807, %v361
        %v809 = vpop.permute.xlu0 %808
        %811 = vset.pattern.permute.xlu0 2
        %812 = vperm.xlu0 %811, %v362
        %v813 = vpop.permute.xlu0 %812
        %815 = vset.pattern.permute.xlu0 2
        %816 = vperm.xlu0 %815, %v363
        %v817 = vpop.permute.xlu0 %816
        %819 = vset.pattern.permute.xlu0 2
        %820 = vperm.xlu0 %819, %v364
        %v821 = vpop.permute.xlu0 %820
        %823 = vset.pattern.permute.xlu0 2
        %824 = vperm.xlu0 %823, %v365
        %v825 = vpop.permute.xlu0 %824
        %827 = vset.pattern.permute.xlu0 2
        %828 = vperm.xlu0 %827, %v366
        %v829 = vpop.permute.xlu0 %828
        %831 = vset.pattern.permute.xlu0 2
        %832 = vperm.xlu0 %831, %v367
        %v833 = vpop.permute.xlu0 %832
        %835 = vset.pattern.permute.xlu0 2
        %836 = vperm.xlu0 %835, %v368
        %v837 = vpop.permute.xlu0 %836
        %839 = vset.pattern.permute.xlu0 2
        %840 = vperm.xlu0 %839, %v369
        %v841 = vpop.permute.xlu0 %840
        %843 = vset.pattern.permute.xlu0 2
        %844 = vperm.xlu0 %843, %v370
        %v845 = vpop.permute.xlu0 %844
        %847 = vset.pattern.permute.xlu0 2
        %848 = vperm.xlu0 %847, %v371
        %v849 = vpop.permute.xlu0 %848
        %851 = vset.pattern.permute.xlu0 2
        %852 = vperm.xlu0 %851, %v372
        %v853 = vpop.permute.xlu0 %852
        %855 = vset.pattern.permute.xlu0 2
        %856 = vperm.xlu0 %855, %v373
        %v857 = vpop.permute.xlu0 %856
        %859 = vset.pattern.permute.xlu0 2
        %860 = vperm.xlu0 %859, %v374
        %v861 = vpop.permute.xlu0 %860
        %863 = vset.pattern.permute.xlu0 2
        %864 = vperm.xlu0 %863, %v375
        %v865 = vpop.permute.xlu0 %864
        %867 = vset.pattern.permute.xlu0 2
        %868 = vperm.xlu0 %867, %v376
        %v869 = vpop.permute.xlu0 %868
        %871 = vset.pattern.permute.xlu0 2
        %872 = vperm.xlu0 %871, %v377
        %v873 = vpop.permute.xlu0 %872
        %875 = vset.pattern.permute.xlu0 2
        %876 = vperm.xlu0 %875, %v378
        %v877 = vpop.permute.xlu0 %876
        %879 = vset.pattern.permute.xlu0 2
        %880 = vperm.xlu0 %879, %v379
        %v881 = vpop.permute.xlu0 %880
        %883 = vset.pattern.permute.xlu0 2
        %884 = vperm.xlu0 %883, %v380
        %v885 = vpop.permute.xlu0 %884
        %887 = vset.pattern.permute.xlu0 2
        %888 = vperm.xlu0 %887, %v381
        %v889 = vpop.permute.xlu0 %888
        %891 = vset.pattern.permute.xlu0 2
        %892 = vperm.xlu0 %891, %v382
        %v893 = vpop.permute.xlu0 %892
        %895 = vset.pattern.permute.xlu0 2
        %896 = vperm.xlu0 %895, %v383
        %v897 = vpop.permute.xlu0 %896
        %899 = vset.pattern.permute.xlu0 2
        %900 = vperm.xlu0 %899, %v384
        %v901 = vpop.permute.xlu0 %900
        %903 = vset.pattern.permute.xlu0 2
        %904 = vperm.xlu0 %903, %v385
        %v905 = vpop.permute.xlu0 %904
        %v907 = vlaneseq
        %v908 = vshrl.u32 %v907, 7
        %v909 = vsub.s32 2, %v908
        %v910 = vrot.slane %v386, %v909
        %v911 = vmul.f32 %v781, %v910
        %v912 = vmul.f32 %v785, %v910
        %v913 = vmul.f32 %v789, %v910
        %v914 = vmul.f32 %v793, %v910
        %v915 = vmul.f32 %v797, %v910
        %v916 = vmul.f32 %v801, %v910
        %v917 = vmul.f32 %v805, %v910
        %v918 = vmul.f32 %v809, %v910
        %v919 = vmul.f32 %v813, %v910
        %v920 = vmul.f32 %v817, %v910
        %v921 = vmul.f32 %v821, %v910
        %v922 = vmul.f32 %v825, %v910
        %v923 = vmul.f32 %v829, %v910
        %v924 = vmul.f32 %v833, %v910
        %v925 = vmul.f32 %v837, %v910
        %v926 = vmul.f32 %v841, %v910
        %v927 = vmul.f32 %v845, %v910
        %v928 = vmul.f32 %v849, %v910
        %v929 = vmul.f32 %v853, %v910
        %v930 = vmul.f32 %v857, %v910
        %v931 = vmul.f32 %v861, %v910
        %v932 = vmul.f32 %v865, %v910
        %v933 = vmul.f32 %v869, %v910
        %v934 = vmul.f32 %v873, %v910
        %v935 = vmul.f32 %v877, %v910
        %v936 = vmul.f32 %v881, %v910
        %v937 = vmul.f32 %v885, %v910
        %v938 = vmul.f32 %v889, %v910
        %v939 = vmul.f32 %v893, %v910
        %v940 = vmul.f32 %v897, %v910
        %v941 = vmul.f32 %v901, %v910
        %v942 = vmul.f32 %v905, %v910
        %v943 = vadd.f32 %v747, %v911
        %v944 = vadd.f32 %v748, %v912
        %v945 = vadd.f32 %v749, %v913
        %v946 = vadd.f32 %v750, %v914
        %v947 = vadd.f32 %v751, %v915
        %v948 = vadd.f32 %v752, %v916
        %v949 = vadd.f32 %v753, %v917
        %v950 = vadd.f32 %v754, %v918
        %v951 = vadd.f32 %v755, %v919
        %v952 = vadd.f32 %v756, %v920
        %v953 = vadd.f32 %v757, %v921
        %v954 = vadd.f32 %v758, %v922
        %v955 = vadd.f32 %v759, %v923
        %v956 = vadd.f32 %v760, %v924
        %v957 = vadd.f32 %v761, %v925
        %v958 = vadd.f32 %v762, %v926
        %v959 = vadd.f32 %v763, %v927
        %v960 = vadd.f32 %v764, %v928
        %v961 = vadd.f32 %v765, %v929
        %v962 = vadd.f32 %v766, %v930
        %v963 = vadd.f32 %v767, %v931
        %v964 = vadd.f32 %v768, %v932
        %v965 = vadd.f32 %v769, %v933
        %v966 = vadd.f32 %v770, %v934
        %v967 = vadd.f32 %v771, %v935
        %v968 = vadd.f32 %v772, %v936
        %v969 = vadd.f32 %v773, %v937
        %v970 = vadd.f32 %v774, %v938
        %v971 = vadd.f32 %v775, %v939
        %v972 = vadd.f32 %v776, %v940
        %v973 = vadd.f32 %v777, %v941
        %v974 = vadd.f32 %v778, %v942
        %v975 = vld [vmem:[#allocation8] sm:$0x1]
        %v977 = vlaneseq
        %v978 = vshrl.u32 %v977, 7
        %v979 = vsub.s32 0, %v978
        %v980 = vrot.slane %v975, %v979
        %v982 = vadd.f32 %v943, %v980
        %v983 = vadd.f32 %v944, %v980
        %v984 = vadd.f32 %v945, %v980
        %v985 = vadd.f32 %v946, %v980
        %v986 = vadd.f32 %v947, %v980
        %v987 = vadd.f32 %v948, %v980
        %v988 = vadd.f32 %v949, %v980
        %v989 = vadd.f32 %v950, %v980
        %v990 = vadd.f32 %v951, %v980
        %v991 = vadd.f32 %v952, %v980
        %v992 = vadd.f32 %v953, %v980
        %v993 = vadd.f32 %v954, %v980
        %v994 = vadd.f32 %v955, %v980
        %v995 = vadd.f32 %v956, %v980
        %v996 = vadd.f32 %v957, %v980
        %v997 = vadd.f32 %v958, %v980
        %v998 = vadd.f32 %v959, %v980
        %v999 = vadd.f32 %v960, %v980
        %v1000 = vadd.f32 %v961, %v980
        %v1001 = vadd.f32 %v962, %v980
        %v1002 = vadd.f32 %v963, %v980
        %v1003 = vadd.f32 %v964, %v980
        %v1004 = vadd.f32 %v965, %v980
        %v1005 = vadd.f32 %v966, %v980
        %v1006 = vadd.f32 %v967, %v980
        %v1007 = vadd.f32 %v968, %v980
        %v1008 = vadd.f32 %v969, %v980
        %v1009 = vadd.f32 %v970, %v980
        %v1010 = vadd.f32 %v971, %v980
        %v1011 = vadd.f32 %v972, %v980
        %v1012 = vadd.f32 %v973, %v980
        %v1013 = vadd.f32 %v974, %v980
        %v1014 = vpack.c.bf16 %v983, %v982
        %v1015 = vpack.c.bf16 %v985, %v984
        %v1016 = vpack.c.bf16 %v987, %v986
        %v1017 = vpack.c.bf16 %v989, %v988
        %v1018 = vpack.c.bf16 %v991, %v990
        %v1019 = vpack.c.bf16 %v993, %v992
        %v1020 = vpack.c.bf16 %v995, %v994
        %v1021 = vpack.c.bf16 %v997, %v996
        %v1022 = vpack.c.bf16 %v999, %v998
        %v1023 = vpack.c.bf16 %v1001, %v1000
        %v1024 = vpack.c.bf16 %v1003, %v1002
        %v1025 = vpack.c.bf16 %v1005, %v1004
        %v1026 = vpack.c.bf16 %v1007, %v1006
        %v1027 = vpack.c.bf16 %v1009, %v1008
        %v1028 = vpack.c.bf16 %v1011, %v1010
        %v1029 = vpack.c.bf16 %v1013, %v1012
        %v1046 = vunpack.c.l.b16 %v1014
        %v1047 = vunpack.c.h.b16 %v1014
        %v1048 = vunpack.c.l.b16 %v1015
        %v1049 = vunpack.c.h.b16 %v1015
        %v1050 = vunpack.c.l.b16 %v1016
        %v1051 = vunpack.c.h.b16 %v1016
        %v1052 = vunpack.c.l.b16 %v1017
        %v1053 = vunpack.c.h.b16 %v1017
        %v1054 = vunpack.c.l.b16 %v1018
        %v1055 = vunpack.c.h.b16 %v1018
        %v1056 = vunpack.c.l.b16 %v1019
        %v1057 = vunpack.c.h.b16 %v1019
        %v1058 = vunpack.c.l.b16 %v1020
        %v1059 = vunpack.c.h.b16 %v1020
        %v1060 = vunpack.c.l.b16 %v1021
        %v1061 = vunpack.c.h.b16 %v1021
        %v1062 = vunpack.c.l.b16 %v1022
        %v1063 = vunpack.c.h.b16 %v1022
        %v1064 = vunpack.c.l.b16 %v1023
        %v1065 = vunpack.c.h.b16 %v1023
        %v1066 = vunpack.c.l.b16 %v1024
        %v1067 = vunpack.c.h.b16 %v1024
        %v1068 = vunpack.c.l.b16 %v1025
        %v1069 = vunpack.c.h.b16 %v1025
        %v1070 = vunpack.c.l.b16 %v1026
        %v1071 = vunpack.c.h.b16 %v1026
        %v1072 = vunpack.c.l.b16 %v1027
        %v1073 = vunpack.c.h.b16 %v1027
        %v1074 = vunpack.c.l.b16 %v1028
        %v1075 = vunpack.c.h.b16 %v1028
        %v1076 = vunpack.c.l.b16 %v1029
        %v1077 = vunpack.c.h.b16 %v1029
        %v1078 = vpack.c.b16 %v1046, %v1046
        %v1079 = vpack.c.b16 %v1047, %v1047
        %v1080 = vpack.c.b16 %v1048, %v1048
        %v1081 = vpack.c.b16 %v1049, %v1049
        %v1082 = vpack.c.b16 %v1050, %v1050
        %v1083 = vpack.c.b16 %v1051, %v1051
        %v1084 = vpack.c.b16 %v1052, %v1052
        %v1085 = vpack.c.b16 %v1053, %v1053
        %v1086 = vpack.c.b16 %v1054, %v1054
        %v1087 = vpack.c.b16 %v1055, %v1055
        %v1088 = vpack.c.b16 %v1056, %v1056
        %v1089 = vpack.c.b16 %v1057, %v1057
        %v1090 = vpack.c.b16 %v1058, %v1058
        %v1091 = vpack.c.b16 %v1059, %v1059
        %v1092 = vpack.c.b16 %v1060, %v1060
        %v1093 = vpack.c.b16 %v1061, %v1061
        %v1094 = vpack.c.b16 %v1062, %v1062
        %v1095 = vpack.c.b16 %v1063, %v1063
        %v1096 = vpack.c.b16 %v1064, %v1064
        %v1097 = vpack.c.b16 %v1065, %v1065
        %v1098 = vpack.c.b16 %v1066, %v1066
        %v1099 = vpack.c.b16 %v1067, %v1067
        %v1100 = vpack.c.b16 %v1068, %v1068
        %v1101 = vpack.c.b16 %v1069, %v1069
        %v1102 = vpack.c.b16 %v1070, %v1070
        %v1103 = vpack.c.b16 %v1071, %v1071
        %v1104 = vpack.c.b16 %v1072, %v1072
        %v1105 = vpack.c.b16 %v1073, %v1073
        %v1106 = vpack.c.b16 %v1074, %v1074
        %v1107 = vpack.c.b16 %v1075, %v1075
        %v1108 = vpack.c.b16 %v1076, %v1076
        %v1109 = vpack.c.b16 %v1077, %v1077
        %vm1142 = vcmask 257024
        %1143 = vst.msk [vmem:[%s338] sm:$0xf] %vm1142, %v1078
        %1144 = vst.msk [vmem:[%s338 + $0x4] sm:$0xf] %vm1142, %v1079
        %1145 = vst.msk [vmem:[%s338 + $0x8] sm:$0xf] %vm1142, %v1080
        %1146 = vst.msk [vmem:[%s338 + $0xc] sm:$0xf] %vm1142, %v1081
        %1147 = vst.msk [vmem:[%s338 + $0x10] sm:$0xf] %vm1142, %v1082
        %1148 = vst.msk [vmem:[%s338 + $0x14] sm:$0xf] %vm1142, %v1083
        %1149 = vst.msk [vmem:[%s338 + $0x18] sm:$0xf] %vm1142, %v1084
        %1150 = vst.msk [vmem:[%s338 + $0x1c] sm:$0xf] %vm1142, %v1085
        %1151 = vst.msk [vmem:[%s338 + $0x20] sm:$0xf] %vm1142, %v1086
        %1152 = vst.msk [vmem:[%s338 + $0x24] sm:$0xf] %vm1142, %v1087
        %1153 = vst.msk [vmem:[%s338 + $0x28] sm:$0xf] %vm1142, %v1088
        %1154 = vst.msk [vmem:[%s338 + $0x2c] sm:$0xf] %vm1142, %v1089
        %1155 = vst.msk [vmem:[%s338 + $0x30] sm:$0xf] %vm1142, %v1090
        %1156 = vst.msk [vmem:[%s338 + $0x34] sm:$0xf] %vm1142, %v1091
        %1157 = vst.msk [vmem:[%s338 + $0x38] sm:$0xf] %vm1142, %v1092
        %1158 = vst.msk [vmem:[%s338 + $0x3c] sm:$0xf] %vm1142, %v1093
        %1159 = vst.msk [vmem:[%s338 + $0x40] sm:$0xf] %vm1142, %v1094
        %1160 = vst.msk [vmem:[%s338 + $0x44] sm:$0xf] %vm1142, %v1095
        %1161 = vst.msk [vmem:[%s338 + $0x48] sm:$0xf] %vm1142, %v1096
        %1162 = vst.msk [vmem:[%s338 + $0x4c] sm:$0xf] %vm1142, %v1097
        %1163 = vst.msk [vmem:[%s338 + $0x50] sm:$0xf] %vm1142, %v1098
        %1164 = vst.msk [vmem:[%s338 + $0x54] sm:$0xf] %vm1142, %v1099
        %1165 = vst.msk [vmem:[%s338 + $0x58] sm:$0xf] %vm1142, %v1100
        %1166 = vst.msk [vmem:[%s338 + $0x5c] sm:$0xf] %vm1142, %v1101
        %1167 = vst.msk [vmem:[%s338 + $0x60] sm:$0xf] %vm1142, %v1102
        %1168 = vst.msk [vmem:[%s338 + $0x64] sm:$0xf] %vm1142, %v1103
        %1169 = vst.msk [vmem:[%s338 + $0x68] sm:$0xf] %vm1142, %v1104
        %1170 = vst.msk [vmem:[%s338 + $0x6c] sm:$0xf] %vm1142, %v1105
        %1171 = vst.msk [vmem:[%s338 + $0x70] sm:$0xf] %vm1142, %v1106
        %1172 = vst.msk [vmem:[%s338 + $0x74] sm:$0xf] %vm1142, %v1107
        %1173 = vst.msk [vmem:[%s338 + $0x78] sm:$0xf] %vm1142, %v1108
        %1174 = vst.msk [vmem:[%s338 + $0x7c] sm:$0xf] %vm1142, %v1109
        %v1175 = vld [vmem:[%s301] sm:$0xff]
        %v1176 = vld [vmem:[%s301 + $0x8] sm:$0xff]
        %v1177 = vld [vmem:[%s301 + $0x10] sm:$0xff]
        %v1178 = vld [vmem:[%s301 + $0x18] sm:$0xff]
        %v1179 = vld [vmem:[%s301 + $0x20] sm:$0xff]
        %v1180 = vld [vmem:[%s301 + $0x28] sm:$0xff]
        %v1181 = vld [vmem:[%s301 + $0x30] sm:$0xff]
        %v1182 = vld [vmem:[%s301 + $0x38] sm:$0xff]
        %v1183 = vld [vmem:[%s301 + $0x40] sm:$0xff]
        %v1184 = vld [vmem:[%s301 + $0x48] sm:$0xff]
        %v1185 = vld [vmem:[%s301 + $0x50] sm:$0xff]
        %v1186 = vld [vmem:[%s301 + $0x58] sm:$0xff]
        %v1187 = vld [vmem:[%s301 + $0x60] sm:$0xff]
        %v1188 = vld [vmem:[%s301 + $0x68] sm:$0xff]
        %v1189 = vld [vmem:[%s301 + $0x70] sm:$0xff]
        %v1190 = vld [vmem:[%s301 + $0x78] sm:$0xff]
        %v1191 = vld [vmem:[%s301 + $0x80] sm:$0xff]
        %v1192 = vld [vmem:[%s301 + $0x88] sm:$0xff]
        %v1193 = vld [vmem:[%s301 + $0x90] sm:$0xff]
        %v1194 = vld [vmem:[%s301 + $0x98] sm:$0xff]
        %v1195 = vld [vmem:[%s301 + $0xa0] sm:$0xff]
        %v1196 = vld [vmem:[%s301 + $0xa8] sm:$0xff]
        %v1197 = vld [vmem:[%s301 + $0xb0] sm:$0xff]
        %v1198 = vld [vmem:[%s301 + $0xb8] sm:$0xff]
        %v1199 = vld [vmem:[%s301 + $0xc0] sm:$0xff]
        %v1200 = vld [vmem:[%s301 + $0xc8] sm:$0xff]
        %v1201 = vld [vmem:[%s301 + $0xd0] sm:$0xff]
        %v1202 = vld [vmem:[%s301 + $0xd8] sm:$0xff]
        %v1203 = vld [vmem:[%s301 + $0xe0] sm:$0xff]
        %v1204 = vld [vmem:[%s301 + $0xe8] sm:$0xff]
        %v1205 = vld [vmem:[%s301 + $0xf0] sm:$0xff]
        %v1206 = vld [vmem:[%s301 + $0xf8] sm:$0xff]
        %1208 = vset.pattern.permute.xlu0 0
        %1209 = vperm.xlu0 %1208, %v1175
        %v1210 = vpop.permute.xlu0 %1209
        %1213 = vset.pattern.permute.xlu0 0
        %1214 = vperm.xlu0 %1213, %v1176
        %v1215 = vpop.permute.xlu0 %1214
        %1218 = vset.pattern.permute.xlu0 0
        %1219 = vperm.xlu0 %1218, %v1177
        %v1220 = vpop.permute.xlu0 %1219
        %1223 = vset.pattern.permute.xlu0 0
        %1224 = vperm.xlu0 %1223, %v1178
        %v1225 = vpop.permute.xlu0 %1224
        %1228 = vset.pattern.permute.xlu0 0
        %1229 = vperm.xlu0 %1228, %v1179
        %v1230 = vpop.permute.xlu0 %1229
        %1233 = vset.pattern.permute.xlu0 0
        %1234 = vperm.xlu0 %1233, %v1180
        %v1235 = vpop.permute.xlu0 %1234
        %1238 = vset.pattern.permute.xlu0 0
        %1239 = vperm.xlu0 %1238, %v1181
        %v1240 = vpop.permute.xlu0 %1239
        %1243 = vset.pattern.permute.xlu0 0
        %1244 = vperm.xlu0 %1243, %v1182
        %v1245 = vpop.permute.xlu0 %1244
        %1248 = vset.pattern.permute.xlu0 0
        %1249 = vperm.xlu0 %1248, %v1183
        %v1250 = vpop.permute.xlu0 %1249
        %1253 = vset.pattern.permute.xlu0 0
        %1254 = vperm.xlu0 %1253, %v1184
        %v1255 = vpop.permute.xlu0 %1254
        %1258 = vset.pattern.permute.xlu0 0
        %1259 = vperm.xlu0 %1258, %v1185
        %v1260 = vpop.permute.xlu0 %1259
        %1263 = vset.pattern.permute.xlu0 0
        %1264 = vperm.xlu0 %1263, %v1186
        %v1265 = vpop.permute.xlu0 %1264
        %1268 = vset.pattern.permute.xlu0 0
        %1269 = vperm.xlu0 %1268, %v1187
        %v1270 = vpop.permute.xlu0 %1269
        %1273 = vset.pattern.permute.xlu0 0
        %1274 = vperm.xlu0 %1273, %v1188
        %v1275 = vpop.permute.xlu0 %1274
        %1278 = vset.pattern.permute.xlu0 0
        %1279 = vperm.xlu0 %1278, %v1189
        %v1280 = vpop.permute.xlu0 %1279
        %1283 = vset.pattern.permute.xlu0 0
        %1284 = vperm.xlu0 %1283, %v1190
        %v1285 = vpop.permute.xlu0 %1284
        %1288 = vset.pattern.permute.xlu0 0
        %1289 = vperm.xlu0 %1288, %v1191
        %v1290 = vpop.permute.xlu0 %1289
        %1293 = vset.pattern.permute.xlu0 0
        %1294 = vperm.xlu0 %1293, %v1192
        %v1295 = vpop.permute.xlu0 %1294
        %1298 = vset.pattern.permute.xlu0 0
        %1299 = vperm.xlu0 %1298, %v1193
        %v1300 = vpop.permute.xlu0 %1299
        %1303 = vset.pattern.permute.xlu0 0
        %1304 = vperm.xlu0 %1303, %v1194
        %v1305 = vpop.permute.xlu0 %1304
        %1308 = vset.pattern.permute.xlu0 0
        %1309 = vperm.xlu0 %1308, %v1195
        %v1310 = vpop.permute.xlu0 %1309
        %1313 = vset.pattern.permute.xlu0 0
        %1314 = vperm.xlu0 %1313, %v1196
        %v1315 = vpop.permute.xlu0 %1314
        %1318 = vset.pattern.permute.xlu0 0
        %1319 = vperm.xlu0 %1318, %v1197
        %v1320 = vpop.permute.xlu0 %1319
        %1323 = vset.pattern.permute.xlu0 0
        %1324 = vperm.xlu0 %1323, %v1198
        %v1325 = vpop.permute.xlu0 %1324
        %1328 = vset.pattern.permute.xlu0 0
        %1329 = vperm.xlu0 %1328, %v1199
        %v1330 = vpop.permute.xlu0 %1329
        %1333 = vset.pattern.permute.xlu0 0
        %1334 = vperm.xlu0 %1333, %v1200
        %v1335 = vpop.permute.xlu0 %1334
        %1338 = vset.pattern.permute.xlu0 0
        %1339 = vperm.xlu0 %1338, %v1201
        %v1340 = vpop.permute.xlu0 %1339
        %1343 = vset.pattern.permute.xlu0 0
        %1344 = vperm.xlu0 %1343, %v1202
        %v1345 = vpop.permute.xlu0 %1344
        %1348 = vset.pattern.permute.xlu0 0
        %1349 = vperm.xlu0 %1348, %v1203
        %v1350 = vpop.permute.xlu0 %1349
        %1353 = vset.pattern.permute.xlu0 0
        %1354 = vperm.xlu0 %1353, %v1204
        %v1355 = vpop.permute.xlu0 %1354
        %1358 = vset.pattern.permute.xlu0 0
        %1359 = vperm.xlu0 %1358, %v1205
        %v1360 = vpop.permute.xlu0 %1359
        %1363 = vset.pattern.permute.xlu0 0
        %1364 = vperm.xlu0 %1363, %v1206
        %v1365 = vpop.permute.xlu0 %1364
        %v1367 = vmul.f32 %v982, %v1210
        %v1368 = vmul.f32 %v983, %v1215
        %v1369 = vmul.f32 %v984, %v1220
        %v1370 = vmul.f32 %v985, %v1225
        %v1371 = vmul.f32 %v986, %v1230
        %v1372 = vmul.f32 %v987, %v1235
        %v1373 = vmul.f32 %v988, %v1240
        %v1374 = vmul.f32 %v989, %v1245
        %v1375 = vmul.f32 %v990, %v1250
        %v1376 = vmul.f32 %v991, %v1255
        %v1377 = vmul.f32 %v992, %v1260
        %v1378 = vmul.f32 %v993, %v1265
        %v1379 = vmul.f32 %v994, %v1270
        %v1380 = vmul.f32 %v995, %v1275
        %v1381 = vmul.f32 %v996, %v1280
        %v1382 = vmul.f32 %v997, %v1285
        %v1383 = vmul.f32 %v998, %v1290
        %v1384 = vmul.f32 %v999, %v1295
        %v1385 = vmul.f32 %v1000, %v1300
        %v1386 = vmul.f32 %v1001, %v1305
        %v1387 = vmul.f32 %v1002, %v1310
        %v1388 = vmul.f32 %v1003, %v1315
        %v1389 = vmul.f32 %v1004, %v1320
        %v1390 = vmul.f32 %v1005, %v1325
        %v1391 = vmul.f32 %v1006, %v1330
        %v1392 = vmul.f32 %v1007, %v1335
        %v1393 = vmul.f32 %v1008, %v1340
        %v1394 = vmul.f32 %v1009, %v1345
        %v1395 = vmul.f32 %v1010, %v1350
        %v1396 = vmul.f32 %v1011, %v1355
        %v1397 = vmul.f32 %v1012, %v1360
        %v1398 = vmul.f32 %v1013, %v1365
        %vm1399 = vcmask 261120
        %v1400 = vsel %vm1399, %v1367, 0.0
        %v1401 = vsel %vm1399, %v1368, 0.0
        %v1402 = vadd.f32 %v1400, %v1401
        %v1403 = vsel %vm1399, %v1369, 0.0
        %v1404 = vadd.f32 %v1402, %v1403
        %v1405 = vsel %vm1399, %v1370, 0.0
        %v1406 = vadd.f32 %v1404, %v1405
        %v1407 = vsel %vm1399, %v1371, 0.0
        %v1408 = vadd.f32 %v1406, %v1407
        %v1409 = vsel %vm1399, %v1372, 0.0
        %v1410 = vadd.f32 %v1408, %v1409
        %v1411 = vsel %vm1399, %v1373, 0.0
        %v1412 = vadd.f32 %v1410, %v1411
        %v1413 = vsel %vm1399, %v1374, 0.0
        %v1414 = vadd.f32 %v1412, %v1413
        %v1415 = vsel %vm1399, %v1375, 0.0
        %v1416 = vadd.f32 %v1414, %v1415
        %v1417 = vsel %vm1399, %v1376, 0.0
        %v1418 = vadd.f32 %v1416, %v1417
        %v1419 = vsel %vm1399, %v1377, 0.0
        %v1420 = vadd.f32 %v1418, %v1419
        %v1421 = vsel %vm1399, %v1378, 0.0
        %v1422 = vadd.f32 %v1420, %v1421
        %v1423 = vsel %vm1399, %v1379, 0.0
        %v1424 = vadd.f32 %v1422, %v1423
        %v1425 = vsel %vm1399, %v1380, 0.0
        %v1426 = vadd.f32 %v1424, %v1425
        %v1427 = vsel %vm1399, %v1381, 0.0
        %v1428 = vadd.f32 %v1426, %v1427
        %v1429 = vsel %vm1399, %v1382, 0.0
        %v1430 = vadd.f32 %v1428, %v1429
        %v1431 = vsel %vm1399, %v1383, 0.0
        %v1432 = vadd.f32 %v1430, %v1431
        %v1433 = vsel %vm1399, %v1384, 0.0
        %v1434 = vadd.f32 %v1432, %v1433
        %v1435 = vsel %vm1399, %v1385, 0.0
        %v1436 = vadd.f32 %v1434, %v1435
        %v1437 = vsel %vm1399, %v1386, 0.0
        %v1438 = vadd.f32 %v1436, %v1437
        %v1439 = vsel %vm1399, %v1387, 0.0
        %v1440 = vadd.f32 %v1438, %v1439
        %v1441 = vsel %vm1399, %v1388, 0.0
        %v1442 = vadd.f32 %v1440, %v1441
        %v1443 = vsel %vm1399, %v1389, 0.0
        %v1444 = vadd.f32 %v1442, %v1443
        %v1445 = vsel %vm1399, %v1390, 0.0
        %v1446 = vadd.f32 %v1444, %v1445
        %v1447 = vsel %vm1399, %v1391, 0.0
        %v1448 = vadd.f32 %v1446, %v1447
        %v1449 = vsel %vm1399, %v1392, 0.0
        %v1450 = vadd.f32 %v1448, %v1449
        %v1451 = vsel %vm1399, %v1393, 0.0
        %v1452 = vadd.f32 %v1450, %v1451
        %v1453 = vsel %vm1399, %v1394, 0.0
        %v1454 = vadd.f32 %v1452, %v1453
        %v1455 = vsel %vm1399, %v1395, 0.0
        %v1456 = vadd.f32 %v1454, %v1455
        %v1457 = vsel %vm1399, %v1396, 0.0
        %v1458 = vadd.f32 %v1456, %v1457
        %v1459 = vsel %vm1399, %v1397, 0.0
        %v1460 = vadd.f32 %v1458, %v1459
        %v1461 = vsel %vm1399, %v1398, 0.0
        %v1462 = vadd.f32 %v1460, %v1461
        %v1463 = vrot.slane %v1462, 4
        %v1464 = vadd.f32 %v1462, %v1463
        %v1465 = vrot.slane %v1464, 2
        %v1466 = vadd.f32 %v1464, %v1465
        %v1467 = vrot.slane %v1466, 1
        %v1468 = vadd.f32 %v1466, %v1467
        %vm1469 = vcmask 253952
        %1470 = vst.msk [vmem:[%s344] sm:$0x1] %vm1469, %v1468
        %v1471 = vmul.f32 %v1367, %v982
        %v1472 = vmul.f32 %v1368, %v983
        %v1473 = vmul.f32 %v1369, %v984
        %v1474 = vmul.f32 %v1370, %v985
        %v1475 = vmul.f32 %v1371, %v986
        %v1476 = vmul.f32 %v1372, %v987
        %v1477 = vmul.f32 %v1373, %v988
        %v1478 = vmul.f32 %v1374, %v989
        %v1479 = vmul.f32 %v1375, %v990
        %v1480 = vmul.f32 %v1376, %v991
        %v1481 = vmul.f32 %v1377, %v992
        %v1482 = vmul.f32 %v1378, %v993
        %v1483 = vmul.f32 %v1379, %v994
        %v1484 = vmul.f32 %v1380, %v995
        %v1485 = vmul.f32 %v1381, %v996
        %v1486 = vmul.f32 %v1382, %v997
        %v1487 = vmul.f32 %v1383, %v998
        %v1488 = vmul.f32 %v1384, %v999
        %v1489 = vmul.f32 %v1385, %v1000
        %v1490 = vmul.f32 %v1386, %v1001
        %v1491 = vmul.f32 %v1387, %v1002
        %v1492 = vmul.f32 %v1388, %v1003
        %v1493 = vmul.f32 %v1389, %v1004
        %v1494 = vmul.f32 %v1390, %v1005
        %v1495 = vmul.f32 %v1391, %v1006
        %v1496 = vmul.f32 %v1392, %v1007
        %v1497 = vmul.f32 %v1393, %v1008
        %v1498 = vmul.f32 %v1394, %v1009
        %v1499 = vmul.f32 %v1395, %v1010
        %v1500 = vmul.f32 %v1396, %v1011
        %v1501 = vmul.f32 %v1397, %v1012
        %v1502 = vmul.f32 %v1398, %v1013
        %v1503 = vsel %vm1399, %v1471, 0.0
        %v1504 = vsel %vm1399, %v1472, 0.0
        %v1505 = vadd.f32 %v1503, %v1504
        %v1506 = vsel %vm1399, %v1473, 0.0
        %v1507 = vadd.f32 %v1505, %v1506
        %v1508 = vsel %vm1399, %v1474, 0.0
        %v1509 = vadd.f32 %v1507, %v1508
        %v1510 = vsel %vm1399, %v1475, 0.0
        %v1511 = vadd.f32 %v1509, %v1510
        %v1512 = vsel %vm1399, %v1476, 0.0
        %v1513 = vadd.f32 %v1511, %v1512
        %v1514 = vsel %vm1399, %v1477, 0.0
        %v1515 = vadd.f32 %v1513, %v1514
        %v1516 = vsel %vm1399, %v1478, 0.0
        %v1517 = vadd.f32 %v1515, %v1516
        %v1518 = vsel %vm1399, %v1479, 0.0
        %v1519 = vadd.f32 %v1517, %v1518
        %v1520 = vsel %vm1399, %v1480, 0.0
        %v1521 = vadd.f32 %v1519, %v1520
        %v1522 = vsel %vm1399, %v1481, 0.0
        %v1523 = vadd.f32 %v1521, %v1522
        %v1524 = vsel %vm1399, %v1482, 0.0
        %v1525 = vadd.f32 %v1523, %v1524
        %v1526 = vsel %vm1399, %v1483, 0.0
        %v1527 = vadd.f32 %v1525, %v1526
        %v1528 = vsel %vm1399, %v1484, 0.0
        %v1529 = vadd.f32 %v1527, %v1528
        %v1530 = vsel %vm1399, %v1485, 0.0
        %v1531 = vadd.f32 %v1529, %v1530
        %v1532 = vsel %vm1399, %v1486, 0.0
        %v1533 = vadd.f32 %v1531, %v1532
        %v1534 = vsel %vm1399, %v1487, 0.0
        %v1535 = vadd.f32 %v1533, %v1534
        %v1536 = vsel %vm1399, %v1488, 0.0
        %v1537 = vadd.f32 %v1535, %v1536
        %v1538 = vsel %vm1399, %v1489, 0.0
        %v1539 = vadd.f32 %v1537, %v1538
        %v1540 = vsel %vm1399, %v1490, 0.0
        %v1541 = vadd.f32 %v1539, %v1540
        %v1542 = vsel %vm1399, %v1491, 0.0
        %v1543 = vadd.f32 %v1541, %v1542
        %v1544 = vsel %vm1399, %v1492, 0.0
        %v1545 = vadd.f32 %v1543, %v1544
        %v1546 = vsel %vm1399, %v1493, 0.0
        %v1547 = vadd.f32 %v1545, %v1546
        %v1548 = vsel %vm1399, %v1494, 0.0
        %v1549 = vadd.f32 %v1547, %v1548
        %v1550 = vsel %vm1399, %v1495, 0.0
        %v1551 = vadd.f32 %v1549, %v1550
        %v1552 = vsel %vm1399, %v1496, 0.0
        %v1553 = vadd.f32 %v1551, %v1552
        %v1554 = vsel %vm1399, %v1497, 0.0
        %v1555 = vadd.f32 %v1553, %v1554
        %v1556 = vsel %vm1399, %v1498, 0.0
        %v1557 = vadd.f32 %v1555, %v1556
        %v1558 = vsel %vm1399, %v1499, 0.0
        %v1559 = vadd.f32 %v1557, %v1558
        %v1560 = vsel %vm1399, %v1500, 0.0
        %v1561 = vadd.f32 %v1559, %v1560
        %v1562 = vsel %vm1399, %v1501, 0.0
        %v1563 = vadd.f32 %v1561, %v1562
        %v1564 = vsel %vm1399, %v1502, 0.0
        %v1565 = vadd.f32 %v1563, %v1564
        %v1566 = vrot.slane %v1565, 4
        %v1567 = vadd.f32 %v1565, %v1566
        %v1568 = vrot.slane %v1567, 2
        %v1569 = vadd.f32 %v1567, %v1568
        %v1570 = vrot.slane %v1569, 1
        %v1571 = vadd.f32 %v1569, %v1570
        %1572 = vst.msk [vmem:[%s350] sm:$0x1] %vm1469, %v1571
        %s1573 = sand.u32 %s133, 1
        %s1574 = scalar_lea.sflag [#allocation4], %s1573
        %s1575 = sand.u32 %s133, 1
        %s1576 = smul.addr %s1575, 128
        %s1577 = scalar_lea.vmem [#allocation10], %s1576
        %s1578 = sand.u32 %s31, 1
        %s1579 = scalar_lea.sflag [#allocation12], %s1578
        %s1580 = sand.u32 %s159, 1
        %s1581 = scalar_lea.vmem [#allocation11], %s1580
        %s1582 = sand.u32 %s31, 1
        %s1583 = scalar_lea.sflag [#allocation12], %s1582
        %s1584 = sand.u32 %s185, 1
        %s1585 = scalar_lea.vmem [#allocation13], %s1584
        // Predicated region
        $region53: #{tpu_custom_call.1} parent=35 // pred_check
          %p1586 = pneg %p143
        $region54: #{tpu_custom_call.1} parent=35 // pred_check_branch
          %1588 = sbr.rel (%p1586) target = $region56
        $region55: #{tpu_custom_call.1} parent=35 // pred_region
          %s1589 = smul.u32 32, %s31
          %s1591 = ssub.s32 2048, 2048
          %1592 = vsyncadd %s1574, %s1591
          %s1593 = smul.addr %s1589, 64
          %s1594 = scalar_lea.hbm %s4, %s1593
          %s1595 = sshll.u32 %s1577, 4
          %s1596 = int_to_ptr.vmem [resolvable:$true] %s1595
          %1601 = dma.vmem_to_hbm [thread:$0]  %s1596, 2048, %s1594, %s1574, 64, 64, 4
        $region56: #{tpu_custom_call.1} parent=35 // pred_fallthru
          _
        // Predicated region
        $region57: #{tpu_custom_call.1} parent=35 // pred_check
          %p1602 = pneg %p169
        $region58: #{tpu_custom_call.1} parent=35 // pred_check_branch
          %1604 = sbr.rel (%p1602) target = $region60
        $region59: #{tpu_custom_call.1} parent=35 // pred_region
          %s1606 = ssub.s32 16, 16
          %1607 = vsyncadd %s1579, %s1606
          %s1608 = smul.addr %s31, 16
          %s1609 = scalar_lea.hbm %s5, %s1608
          %s1611 = sshll.u32 %s1581, 4
          %s1612 = int_to_ptr.vmem [resolvable:$true] %s1611
          %1614 = dma.vmem_to_hbm [thread:$0]  %s1612, 16, %s1609, %s1579
        $region60: #{tpu_custom_call.1} parent=35 // pred_fallthru
          _
        // Predicated region
        $region61: #{tpu_custom_call.1} parent=35 // pred_check
          %p1615 = pneg %p195
        $region62: #{tpu_custom_call.1} parent=35 // pred_check_branch
          %1617 = sbr.rel (%p1615) target = $region64
        $region63: #{tpu_custom_call.1} parent=35 // pred_region
          %s1619 = ssub.s32 16, 16
          %1620 = vsyncadd %s1583, %s1619
          %s1621 = smul.addr %s31, 16
          %s1622 = scalar_lea.hbm %s6, %s1621
          %s1624 = sshll.u32 %s1585, 4
          %s1625 = int_to_ptr.vmem [resolvable:$true] %s1624
          %1627 = dma.vmem_to_hbm [thread:$0]  %s1625, 16, %s1622, %s1583
        $region64: #{tpu_custom_call.1} parent=35 // pred_fallthru
          _
      $region36: #{tpu_custom_call.1} parent=5 // pred_fallthru
        _
      %p1628 = scmp.le.s32.totalorder 2, %s26
      // Predicated region
      $region65: #{tpu_custom_call.1} parent=5 // pred_check
        %p1629 = pneg %p1628
      $region66: #{tpu_custom_call.1} parent=5 // pred_check_branch
        %1631 = sbr.rel (%p1629) target = $region68
      $region67: #{tpu_custom_call.1} parent=5 // pred_region
        %s1632 = ssub.s32 %s26, 2
        // Predicated region
        $region69: #{tpu_custom_call.1} parent=67 // pred_check
          %p1633 = pneg %p149
        $region70: #{tpu_custom_call.1} parent=67 // pred_check_branch
          %1635 = sbr.rel (%p1633) target = $region72
        $region71: #{tpu_custom_call.1} parent=67 // pred_region
          %s1636 = sand.u32 %s134, 1
          %s1637 = scalar_lea.sflag [#allocation4], %s1636
          %s1638 = sand.u32 %s134, 1
          %s1639 = smul.addr %s1638, 128
          %s1640 = scalar_lea.vmem [#allocation10], %s1639
          %1641 = dma.done %s1637, 2048
        $region72: #{tpu_custom_call.1} parent=67 // pred_fallthru
          _
        // Predicated region
        $region73: #{tpu_custom_call.1} parent=67 // pred_check
          %p1642 = pneg %p175
        $region74: #{tpu_custom_call.1} parent=67 // pred_check_branch
          %1644 = sbr.rel (%p1642) target = $region76
        $region75: #{tpu_custom_call.1} parent=67 // pred_region
          %s1645 = sand.u32 %s32, 1
          %s1646 = scalar_lea.sflag [#allocation12], %s1645
          %s1647 = sand.u32 %s160, 1
          %s1648 = scalar_lea.vmem [#allocation11], %s1647
          %1649 = dma.done %s1646, 16
        $region76: #{tpu_custom_call.1} parent=67 // pred_fallthru
          _
        // Predicated region
        $region77: #{tpu_custom_call.1} parent=67 // pred_check
          %p1650 = pneg %p201
        $region78: #{tpu_custom_call.1} parent=67 // pred_check_branch
          %1652 = sbr.rel (%p1650) target = $region80
        $region79: #{tpu_custom_call.1} parent=67 // pred_region
          %s1653 = sand.u32 %s32, 1
          %s1654 = scalar_lea.sflag [#allocation12], %s1653
          %s1655 = sand.u32 %s186, 1
          %s1656 = scalar_lea.vmem [#allocation13], %s1655
          %1657 = dma.done %s1654, 16
        $region80: #{tpu_custom_call.1} parent=67 // pred_fallthru
          _
      $region68: #{tpu_custom_call.1} parent=5 // pred_fallthru
        _
    $region6: #{tpu_custom_call.1} parent=1 // loop_footer
      %s30 = sadd.s32 1, %s26
    $region7: #{tpu_custom_call.1} parent=1 // loop_footer_branch
      %25 = sbr.rel target = $region3
    $region8: #{tpu_custom_call.1} parent=1 // loop_exit
      _
    %1658 = vsyncpa [#allocation3], 1
    %s1659 = scalar_lea.sflag [#allocation3], 1
    %1660 = vsyncpa %s1659, 1
    %1661 = vsyncpa [#allocation6], 1
    %s1662 = scalar_lea.sflag [#allocation6], 1
    %1663 = vsyncpa %s1662, 1
    %1664 = vsyncpa [#allocation9], 1
    %1665 = vsyncpa [#allocation4], 1
    %s1666 = scalar_lea.sflag [#allocation4], 1
    %1667 = vsyncpa %s1666, 1
    %1668 = vsyncpa [#allocation12], 1
    %s1669 = scalar_lea.sflag [#allocation12], 1
    %1670 = vsyncpa %s1669, 1

</llo_original>
